<compile_context>
chip_gen: v7x
topology: tpu7x:2x2x1
jax: 0.10.0
libtpu: 0.0.40
codegen_flags: <defaults>
</compile_context>

<pallas_src>
import jax
import jax.numpy as jnp
from jax.experimental import pallas as pl
from jax.experimental.pallas import tpu as pltpu


def _net_kernel(x_ref, w_ref, b_ref, out_ref):
    # x_ref:   (tile_b, n_feature) f32
    # w_ref:   (n_feature, n_out)  f32   (fused W1 @ W2, VMEM-resident)
    # b_ref:   (1, n_out)          f32   (fused b1 @ W2 + b2, VMEM-resident)
    # out_ref: (tile_b, n_out)     f32
    z = jnp.dot(x_ref[...], w_ref[...], preferred_element_type=jnp.float32)
    z = z + b_ref[...]
    # sigmoid(z) = 1 / (1 + exp(-z)); exp and reciprocal both run on the EUP.
    out_ref[...] = pl.reciprocal(1.0 + jnp.exp(-z), approx=True).astype(out_ref.dtype)


def _num_tensorcores_per_chip():
    """Best-effort detection: v7x has 2 TensorCores/chip, v5e/v6e have 1."""
    try:
        kind = jax.devices()[0].device_kind.lower()
    except Exception:
        return 1
    return 2 if "v7" in kind else 1


def fuse_params(w1, b1, w2, b2):
    """Fuse the two activation-free Linear layers (do this once per model,
    hoisted out of the per-call path)."""
    w = (w1 @ w2).astype(jnp.float32)        # (n_feature, n_out)
    b = (b1 @ w2 + b2).astype(jnp.float32)   # (1, n_out)
    return w, b


def net_forward_fused(x, w, b, *, grid_steps=None):
    """x: (B, n_feature) f32; w: (n_feature, n_out); b: (1, n_out).
    Returns sigmoid(x @ w + b), shape (B, n_out), f32."""
    B, n_feature = x.shape
    n_out = w.shape[1]
    x = x.astype(jnp.float32)

    if grid_steps is None:
        grid_steps = _num_tensorcores_per_chip()
    grid_steps = max(1, min(int(grid_steps), pl.cdiv(B, 16)))

    if grid_steps == 1:
        tile_b = B                                   # block == full dim: always legal
    else:
        tile_b = 16 * pl.cdiv(pl.cdiv(B, grid_steps), 16)  # sublane-aligned tiles
    grid = (pl.cdiv(B, tile_b),)                     # ragged last block is clipped

    out = pl.pallas_call(
        _net_kernel,
        out_shape=jax.ShapeDtypeStruct((B, n_out), jnp.float32),
        grid_spec=pltpu.PrefetchScalarGridSpec(
            num_scalar_prefetch=0,
            grid=grid,
            in_specs=[
                pl.BlockSpec((tile_b, n_feature), lambda i: (i, 0)),
                pl.BlockSpec((n_feature, n_out), lambda i: (0, 0)),  # resident
                pl.BlockSpec((1, n_out), lambda i: (0, 0)),          # resident
            ],
            out_specs=pl.BlockSpec((tile_b, n_out), lambda i: (i, 0)),
        ),
        compiler_params=pltpu.CompilerParams(
            dimension_semantics=("parallel",),
        ),
        cost_estimate=pl.CostEstimate(
            flops=2 * B * n_feature * n_out,
            transcendentals=B * n_out,
            bytes_accessed=(B * n_feature * 4        # x (f32)
                            + n_feature * n_out * 4  # fused W
                            + n_out * 4              # fused b
                            + B * n_out * 4),        # output (unpadded f32)
        ),
    )(x, w, b)
    return out


def net_forward(x, w1, b1, w2, b2, **kw):
    """Convenience wrapper matching the PyTorch parameterization. In a hot
    loop, call fuse_params() once and net_forward_fused() per step instead."""
    w, b = fuse_params(w1, b1, w2, b2)
    return net_forward_fused(x, w, b, **kw)


def init_params(key, n_feature, n_hidden, n_output):
    """Deterministic init mimicking torch.nn.Linear (uniform +/- 1/sqrt(fan_in)).
    Weights stored as (in_dim, out_dim) == transpose of PyTorch's (out, in)."""
    k1, k2, k3, k4 = jax.random.split(key, 4)
    lim1 = 1.0 / (n_feature ** 0.5)
    lim2 = 1.0 / (n_hidden ** 0.5)
    w1 = jax.random.uniform(k1, (n_feature, n_hidden), jnp.float32, -lim1, lim1)
    b1 = jax.random.uniform(k2, (1, n_hidden), jnp.float32, -lim1, lim1)
    w2 = jax.random.uniform(k3, (n_hidden, n_output), jnp.float32, -lim2, lim2)
    b2 = jax.random.uniform(k4, (1, n_output), jnp.float32, -lim2, lim2)
    return w1, b1, w2, b2


if __name__ == "__main__":
    key = jax.random.PRNGKey(0)
    kx, kp = jax.random.split(key)

    # Cardio-style tabular shapes.
    batch, n_feature, n_hidden, n_output = 1000, 11, 32, 2

    x = jax.random.normal(kx, (batch, n_feature), jnp.float32)
    w1, b1, w2, b2 = init_params(kp, n_feature, n_hidden, n_output)

    # Hoisted (once-per-model) fusion of the two Linear layers.
    w_fused, b_fused = fuse_params(w1, b1, w2, b2)

    y = net_forward_fused(x, w_fused, b_fused)
    y = jax.block_until_ready(y)
    assert y.shape == (batch, n_output)

    # f32 reference of the original (unfused) forward pass.
    y_ref = jax.nn.sigmoid((x @ w1 + b1) @ w2 + b2)
    assert jnp.allclose(y, y_ref, atol=2e-3, rtol=2e-3), \
        float(jnp.max(jnp.abs(y - y_ref)))

    print("KERNEL_OK")
</pallas_src>

<mosaic_0001>
module attributes {stable_mosaic.version = 11 : i64} {
  func.func @_net_kernel(%arg0: i32, %arg1: memref<1000x11xf32, #tpu.memory_space<vmem>>, %arg2: memref<11x2xf32, #tpu.memory_space<vmem>>, %arg3: memref<1x2xf32, #tpu.memory_space<vmem>>, %arg4: memref<1000x2xf32, #tpu.memory_space<vmem>>) attributes {dimension_semantics = [#tpu.dimension_semantics<parallel>], iteration_bounds = array<i64: 1>, scalar_prefetch = 0 : i64, scratch_operands = 0 : i64, tpu.core_type = #tpu.core_type<tc>, window_params = [{transform_indices = @transform_0, window_bounds = array<i64: 1000, 11>}, {pipeline_mode = #tpu.pipeline_mode<synchronous>, transform_indices = @transform_1, window_bounds = array<i64: 11, 2>}, {pipeline_mode = #tpu.pipeline_mode<synchronous>, transform_indices = @transform_2, window_bounds = array<i64: 1, 2>}, {transform_indices = @transform_3, window_bounds = array<i64: 1000, 2>}]} {
    %c0 = arith.constant 0 : index
    %c0_0 = arith.constant 0 : index
    %0 = vector.load %arg1[%c0, %c0_0] : memref<1000x11xf32, #tpu.memory_space<vmem>>, vector<1000x11xf32>
    %c0_1 = arith.constant 0 : index
    %c0_2 = arith.constant 0 : index
    %1 = vector.load %arg2[%c0_1, %c0_2] : memref<11x2xf32, #tpu.memory_space<vmem>>, vector<11x2xf32>
    %cst = arith.constant dense<0.000000e+00> : vector<1000x2xf32>
    %2 = tpu.matmul %0, %1, %cst {dimension_numbers = #tpu.dot_dimension_numbers<[1], [0], [0], [1], [0, 0, 1, 1], [], []>} : vector<1000x11xf32>, vector<11x2xf32>, vector<1000x2xf32> -> vector<1000x2xf32>
    %c0_3 = arith.constant 0 : index
    %c0_4 = arith.constant 0 : index
    %3 = vector.load %arg3[%c0_3, %c0_4] : memref<1x2xf32, #tpu.memory_space<vmem>>, vector<1x2xf32>
    %4 = vector.broadcast %3 : vector<1x2xf32> to vector<1000x2xf32>
    %5 = arith.addf %2, %4 : vector<1000x2xf32>
    %cst_5 = arith.constant 0.000000e+00 : f32
    %6 = vector.broadcast %cst_5 : f32 to vector<1000x2xf32>
    %7 = arith.subf %6, %5 : vector<1000x2xf32>
    %8 = math.exp %7 : vector<1000x2xf32>
    %cst_6 = arith.constant 1.000000e+00 : f32
    %9 = vector.broadcast %cst_6 : f32 to vector<1000x2xf32>
    %10 = arith.addf %9, %8 : vector<1000x2xf32>
    %11 = tpu.reciprocal %10 {approx = true} : vector<1000x2xf32> -> vector<1000x2xf32>
    %c0_7 = arith.constant 0 : index
    %c0_8 = arith.constant 0 : index
    %12 = vector.load %arg4[%c0_7, %c0_8] : memref<1000x2xf32, #tpu.memory_space<vmem>>, vector<1000x2xf32>
    tpu.vector_store %arg4[%c0_7, %c0_8], %11 {strides = array<i32>} : memref<1000x2xf32, #tpu.memory_space<vmem>>, vector<1000x2xf32>,
    return
  }
  func.func @transform_0(%arg0: i32) -> (i32, i32) {
    %c0_i32 = arith.constant 0 : i32
    %c0_i32_0 = arith.constant 0 : i32
    return %arg0, %c0_i32 : i32, i32
  }
  func.func @transform_1(%arg0: i32) -> (i32, i32) {
    %c0_i32 = arith.constant 0 : i32
    %c0_i32_0 = arith.constant 0 : i32
    %c0_i32_1 = arith.constant 0 : i32
    return %c0_i32, %c0_i32_0 : i32, i32
  }
  func.func @transform_2(%arg0: i32) -> (i32, i32) {
    %c0_i32 = arith.constant 0 : i32
    %c0_i32_0 = arith.constant 0 : i32
    %c0_i32_1 = arith.constant 0 : i32
    return %c0_i32, %c0_i32_0 : i32, i32
  }
  func.func @transform_3(%arg0: i32) -> (i32, i32) {
    %c0_i32 = arith.constant 0 : i32
    %c0_i32_0 = arith.constant 0 : i32
    return %arg0, %c0_i32 : i32, i32
  }
}

</mosaic_0001>

<llo_original>
// kernel: tpu_custom_call.1
$region0: #{tpu_custom_call.1}
  #allocation0 [shape = 'u32[]', space=smem, size = 0x4, offset = 0x4, fixed_abs, tag = 'smem constant byte address 0x4 - core index']
  #allocation1 [shape = 'u32[144,128]{1,0:T(1,128)}', space=vmem, size = 0x12000, scoped, tag = 'internal scratch']
  %s0 = inlined_call_operand.vmem [shape: f32[1000,11], index: 0, kind: input, shape index: {}]
  %s1 = inlined_call_operand.vmem [shape: f32[11,2], index: 1, kind: input, shape index: {}]
  %s2 = inlined_call_operand.vmem [shape: f32[1,2], index: 2, kind: input, shape index: {}]
  %s3 = inlined_call_operand.vmem [shape: f32[1000,2], index: 3, kind: output, shape index: {}]
  %s4 = sld [smem:[#allocation0]]
  $region22: #{tpu_custom_call.1} parent=0
    _
  %s6 = ssub.s32 1, %s4
  %s7 = scalar_select 0, %s6, %s4
  // Predicated region
  $region2: #{tpu_custom_call.1} parent=0 // pred_check
    _
  $region3: #{tpu_custom_call.1} parent=0 // pred_check_branch
    %9 = sbr.rel (0) target = $region5
  $region4: #{tpu_custom_call.1} parent=0 // pred_region
    _
  $region5: #{tpu_custom_call.1} parent=0 // pred_fallthru
    _
  // Predicated region
  $region6: #{tpu_custom_call.1} parent=0 // pred_check
    _
  $region7: #{tpu_custom_call.1} parent=0 // pred_check_branch
    %11 = sbr.rel (0) target = $region9
  $region8: #{tpu_custom_call.1} parent=0 // pred_region
    _
  $region9: #{tpu_custom_call.1} parent=0 // pred_fallthru
    _
  // Predicated region
  $region10: #{tpu_custom_call.1} parent=0 // pred_check
    _
  $region11: #{tpu_custom_call.1} parent=0 // pred_check_branch
    %13 = sbr.rel (0) target = $region13
  $region12: #{tpu_custom_call.1} parent=0 // pred_region
    _
  $region13: #{tpu_custom_call.1} parent=0 // pred_fallthru
    _
  %v14 = vld [vmem:[%s0] sm:$0xff]
  %v15 = vld [vmem:[%s0 + $0x8] sm:$0xff]
  %v16 = vld [vmem:[%s0 + $0x10] sm:$0xff]
  %v17 = vld [vmem:[%s0 + $0x18] sm:$0xff]
  %v18 = vld [vmem:[%s0 + $0x20] sm:$0xff]
  %v19 = vld [vmem:[%s0 + $0x28] sm:$0xff]
  %v20 = vld [vmem:[%s0 + $0x30] sm:$0xff]
  %v21 = vld [vmem:[%s0 + $0x38] sm:$0xff]
  %v22 = vld [vmem:[%s0 + $0x40] sm:$0xff]
  %v23 = vld [vmem:[%s0 + $0x48] sm:$0xff]
  %v24 = vld [vmem:[%s0 + $0x50] sm:$0xff]
  %v25 = vld [vmem:[%s0 + $0x58] sm:$0xff]
  %v26 = vld [vmem:[%s0 + $0x60] sm:$0xff]
  %v27 = vld [vmem:[%s0 + $0x68] sm:$0xff]
  %v28 = vld [vmem:[%s0 + $0x70] sm:$0xff]
  %v29 = vld [vmem:[%s0 + $0x78] sm:$0xff]
  %v30 = vld [vmem:[%s0 + $0x80] sm:$0xff]
  %v31 = vld [vmem:[%s0 + $0x88] sm:$0xff]
  %v32 = vld [vmem:[%s0 + $0x90] sm:$0xff]
  %v33 = vld [vmem:[%s0 + $0x98] sm:$0xff]
  %v34 = vld [vmem:[%s0 + $0xa0] sm:$0xff]
  %v35 = vld [vmem:[%s0 + $0xa8] sm:$0xff]
  %v36 = vld [vmem:[%s0 + $0xb0] sm:$0xff]
  %v37 = vld [vmem:[%s0 + $0xb8] sm:$0xff]
  %v38 = vld [vmem:[%s0 + $0xc0] sm:$0xff]
  %v39 = vld [vmem:[%s0 + $0xc8] sm:$0xff]
  %v40 = vld [vmem:[%s0 + $0xd0] sm:$0xff]
  %v41 = vld [vmem:[%s0 + $0xd8] sm:$0xff]
  %v42 = vld [vmem:[%s0 + $0xe0] sm:$0xff]
  %v43 = vld [vmem:[%s0 + $0xe8] sm:$0xff]
  %v44 = vld [vmem:[%s0 + $0xf0] sm:$0xff]
  %v45 = vld [vmem:[%s0 + $0xf8] sm:$0xff]
  %v46 = vld [vmem:[%s0 + $0x100] sm:$0xff]
  %v47 = vld [vmem:[%s0 + $0x108] sm:$0xff]
  %v48 = vld [vmem:[%s0 + $0x110] sm:$0xff]
  %v49 = vld [vmem:[%s0 + $0x118] sm:$0xff]
  %v50 = vld [vmem:[%s0 + $0x120] sm:$0xff]
  %v51 = vld [vmem:[%s0 + $0x128] sm:$0xff]
  %v52 = vld [vmem:[%s0 + $0x130] sm:$0xff]
  %v53 = vld [vmem:[%s0 + $0x138] sm:$0xff]
  %v54 = vld [vmem:[%s0 + $0x140] sm:$0xff]
  %v55 = vld [vmem:[%s0 + $0x148] sm:$0xff]
  %v56 = vld [vmem:[%s0 + $0x150] sm:$0xff]
  %v57 = vld [vmem:[%s0 + $0x158] sm:$0xff]
  %v58 = vld [vmem:[%s0 + $0x160] sm:$0xff]
  %v59 = vld [vmem:[%s0 + $0x168] sm:$0xff]
  %v60 = vld [vmem:[%s0 + $0x170] sm:$0xff]
  %v61 = vld [vmem:[%s0 + $0x178] sm:$0xff]
  %v62 = vld [vmem:[%s0 + $0x180] sm:$0xff]
  %v63 = vld [vmem:[%s0 + $0x188] sm:$0xff]
  %v64 = vld [vmem:[%s0 + $0x190] sm:$0xff]
  %v65 = vld [vmem:[%s0 + $0x198] sm:$0xff]
  %v66 = vld [vmem:[%s0 + $0x1a0] sm:$0xff]
  %v67 = vld [vmem:[%s0 + $0x1a8] sm:$0xff]
  %v68 = vld [vmem:[%s0 + $0x1b0] sm:$0xff]
  %v69 = vld [vmem:[%s0 + $0x1b8] sm:$0xff]
  %v70 = vld [vmem:[%s0 + $0x1c0] sm:$0xff]
  %v71 = vld [vmem:[%s0 + $0x1c8] sm:$0xff]
  %v72 = vld [vmem:[%s0 + $0x1d0] sm:$0xff]
  %v73 = vld [vmem:[%s0 + $0x1d8] sm:$0xff]
  %v74 = vld [vmem:[%s0 + $0x1e0] sm:$0xff]
  %v75 = vld [vmem:[%s0 + $0x1e8] sm:$0xff]
  %v76 = vld [vmem:[%s0 + $0x1f0] sm:$0xff]
  %v77 = vld [vmem:[%s0 + $0x1f8] sm:$0xff]
  %v78 = vld [vmem:[%s0 + $0x200] sm:$0xff]
  %v79 = vld [vmem:[%s0 + $0x208] sm:$0xff]
  %v80 = vld [vmem:[%s0 + $0x210] sm:$0xff]
  %v81 = vld [vmem:[%s0 + $0x218] sm:$0xff]
  %v82 = vld [vmem:[%s0 + $0x220] sm:$0xff]
  %v83 = vld [vmem:[%s0 + $0x228] sm:$0xff]
  %v84 = vld [vmem:[%s0 + $0x230] sm:$0xff]
  %v85 = vld [vmem:[%s0 + $0x238] sm:$0xff]
  %v86 = vld [vmem:[%s0 + $0x240] sm:$0xff]
  %v87 = vld [vmem:[%s0 + $0x248] sm:$0xff]
  %v88 = vld [vmem:[%s0 + $0x250] sm:$0xff]
  %v89 = vld [vmem:[%s0 + $0x258] sm:$0xff]
  %v90 = vld [vmem:[%s0 + $0x260] sm:$0xff]
  %v91 = vld [vmem:[%s0 + $0x268] sm:$0xff]
  %v92 = vld [vmem:[%s0 + $0x270] sm:$0xff]
  %v93 = vld [vmem:[%s0 + $0x278] sm:$0xff]
  %v94 = vld [vmem:[%s0 + $0x280] sm:$0xff]
  %v95 = vld [vmem:[%s0 + $0x288] sm:$0xff]
  %v96 = vld [vmem:[%s0 + $0x290] sm:$0xff]
  %v97 = vld [vmem:[%s0 + $0x298] sm:$0xff]
  %v98 = vld [vmem:[%s0 + $0x2a0] sm:$0xff]
  %v99 = vld [vmem:[%s0 + $0x2a8] sm:$0xff]
  %v100 = vld [vmem:[%s0 + $0x2b0] sm:$0xff]
  %v101 = vld [vmem:[%s0 + $0x2b8] sm:$0xff]
  %v102 = vld [vmem:[%s0 + $0x2c0] sm:$0xff]
  %v103 = vld [vmem:[%s0 + $0x2c8] sm:$0xff]
  %v104 = vld [vmem:[%s0 + $0x2d0] sm:$0xff]
  %v105 = vld [vmem:[%s0 + $0x2d8] sm:$0xff]
  %v106 = vld [vmem:[%s0 + $0x2e0] sm:$0xff]
  %v107 = vld [vmem:[%s0 + $0x2e8] sm:$0xff]
  %v108 = vld [vmem:[%s0 + $0x2f0] sm:$0xff]
  %v109 = vld [vmem:[%s0 + $0x2f8] sm:$0xff]
  %v110 = vld [vmem:[%s0 + $0x300] sm:$0xff]
  %v111 = vld [vmem:[%s0 + $0x308] sm:$0xff]
  %v112 = vld [vmem:[%s0 + $0x310] sm:$0xff]
  %v113 = vld [vmem:[%s0 + $0x318] sm:$0xff]
  %v114 = vld [vmem:[%s0 + $0x320] sm:$0xff]
  %v115 = vld [vmem:[%s0 + $0x328] sm:$0xff]
  %v116 = vld [vmem:[%s0 + $0x330] sm:$0xff]
  %v117 = vld [vmem:[%s0 + $0x338] sm:$0xff]
  %v118 = vld [vmem:[%s0 + $0x340] sm:$0xff]
  %v119 = vld [vmem:[%s0 + $0x348] sm:$0xff]
  %v120 = vld [vmem:[%s0 + $0x350] sm:$0xff]
  %v121 = vld [vmem:[%s0 + $0x358] sm:$0xff]
  %v122 = vld [vmem:[%s0 + $0x360] sm:$0xff]
  %v123 = vld [vmem:[%s0 + $0x368] sm:$0xff]
  %v124 = vld [vmem:[%s0 + $0x370] sm:$0xff]
  %v125 = vld [vmem:[%s0 + $0x378] sm:$0xff]
  %v126 = vld [vmem:[%s0 + $0x380] sm:$0xff]
  %v127 = vld [vmem:[%s0 + $0x388] sm:$0xff]
  %v128 = vld [vmem:[%s0 + $0x390] sm:$0xff]
  %v129 = vld [vmem:[%s0 + $0x398] sm:$0xff]
  %v130 = vld [vmem:[%s0 + $0x3a0] sm:$0xff]
  %v131 = vld [vmem:[%s0 + $0x3a8] sm:$0xff]
  %v132 = vld [vmem:[%s0 + $0x3b0] sm:$0xff]
  %v133 = vld [vmem:[%s0 + $0x3b8] sm:$0xff]
  %v134 = vld [vmem:[%s0 + $0x3c0] sm:$0xff]
  %v135 = vld [vmem:[%s0 + $0x3c8] sm:$0xff]
  %v136 = vld [vmem:[%s0 + $0x3d0] sm:$0xff]
  %v137 = vld [vmem:[%s0 + $0x3d8] sm:$0xff]
  %v138 = vld [vmem:[%s0 + $0x3e0] sm:$0xff]
  %v139 = vld [vmem:[%s1] sm:$0xff]
  %v140 = vld [vmem:[%s1 + $0x8] sm:$0x7]
  %v141 = vld [vmem:[%s2] sm:$0x1]
  %v143 = vlaneseq
  %v144 = vshrl.u32 %v143, 7
  %v145 = vsub.s32 0, %v144
  %v146 = vrot.slane %v141, %v145
  %vm148 = vcmask 89088
  %v150 = vsel %vm148, %v14, 0
  %v153 = vsel %vm148, %v15, 0
  %v156 = vsel %vm148, %v16, 0
  %v159 = vsel %vm148, %v17, 0
  %v162 = vsel %vm148, %v18, 0
  %v165 = vsel %vm148, %v19, 0
  %v168 = vsel %vm148, %v20, 0
  %v171 = vsel %vm148, %v21, 0
  %v174 = vsel %vm148, %v22, 0
  %v177 = vsel %vm148, %v23, 0
  %v180 = vsel %vm148, %v24, 0
  %v183 = vsel %vm148, %v25, 0
  %v186 = vsel %vm148, %v26, 0
  %v189 = vsel %vm148, %v27, 0
  %v192 = vsel %vm148, %v28, 0
  %v195 = vsel %vm148, %v29, 0
  %v198 = vsel %vm148, %v30, 0
  %v201 = vsel %vm148, %v31, 0
  %v204 = vsel %vm148, %v32, 0
  %v207 = vsel %vm148, %v33, 0
  %v210 = vsel %vm148, %v34, 0
  %v213 = vsel %vm148, %v35, 0
  %v216 = vsel %vm148, %v36, 0
  %v219 = vsel %vm148, %v37, 0
  %v222 = vsel %vm148, %v38, 0
  %v225 = vsel %vm148, %v39, 0
  %v228 = vsel %vm148, %v40, 0
  %v231 = vsel %vm148, %v41, 0
  %v234 = vsel %vm148, %v42, 0
  %v237 = vsel %vm148, %v43, 0
  %v240 = vsel %vm148, %v44, 0
  %v243 = vsel %vm148, %v45, 0
  %v246 = vsel %vm148, %v46, 0
  %v249 = vsel %vm148, %v47, 0
  %v252 = vsel %vm148, %v48, 0
  %v255 = vsel %vm148, %v49, 0
  %v258 = vsel %vm148, %v50, 0
  %v261 = vsel %vm148, %v51, 0
  %v264 = vsel %vm148, %v52, 0
  %v267 = vsel %vm148, %v53, 0
  %v270 = vsel %vm148, %v54, 0
  %v273 = vsel %vm148, %v55, 0
  %v276 = vsel %vm148, %v56, 0
  %v279 = vsel %vm148, %v57, 0
  %v282 = vsel %vm148, %v58, 0
  %v285 = vsel %vm148, %v59, 0
  %v288 = vsel %vm148, %v60, 0
  %v291 = vsel %vm148, %v61, 0
  %v294 = vsel %vm148, %v62, 0
  %v297 = vsel %vm148, %v63, 0
  %v300 = vsel %vm148, %v64, 0
  %v303 = vsel %vm148, %v65, 0
  %v306 = vsel %vm148, %v66, 0
  %v309 = vsel %vm148, %v67, 0
  %v312 = vsel %vm148, %v68, 0
  %v315 = vsel %vm148, %v69, 0
  %v318 = vsel %vm148, %v70, 0
  %v321 = vsel %vm148, %v71, 0
  %v324 = vsel %vm148, %v72, 0
  %v327 = vsel %vm148, %v73, 0
  %v330 = vsel %vm148, %v74, 0
  %v333 = vsel %vm148, %v75, 0
  %v336 = vsel %vm148, %v76, 0
  %v339 = vsel %vm148, %v77, 0
  %v342 = vsel %vm148, %v78, 0
  %v345 = vsel %vm148, %v79, 0
  %v348 = vsel %vm148, %v80, 0
  %v351 = vsel %vm148, %v81, 0
  %v354 = vsel %vm148, %v82, 0
  %v357 = vsel %vm148, %v83, 0
  %v360 = vsel %vm148, %v84, 0
  %v363 = vsel %vm148, %v85, 0
  %v366 = vsel %vm148, %v86, 0
  %v369 = vsel %vm148, %v87, 0
  %v372 = vsel %vm148, %v88, 0
  %v375 = vsel %vm148, %v89, 0
  %v378 = vsel %vm148, %v90, 0
  %v381 = vsel %vm148, %v91, 0
  %v384 = vsel %vm148, %v92, 0
  %v387 = vsel %vm148, %v93, 0
  %v390 = vsel %vm148, %v94, 0
  %v393 = vsel %vm148, %v95, 0
  %v396 = vsel %vm148, %v96, 0
  %v399 = vsel %vm148, %v97, 0
  %v402 = vsel %vm148, %v98, 0
  %v405 = vsel %vm148, %v99, 0
  %v408 = vsel %vm148, %v100, 0
  %v411 = vsel %vm148, %v101, 0
  %v414 = vsel %vm148, %v102, 0
  %v417 = vsel %vm148, %v103, 0
  %v420 = vsel %vm148, %v104, 0
  %v423 = vsel %vm148, %v105, 0
  %v426 = vsel %vm148, %v106, 0
  %v429 = vsel %vm148, %v107, 0
  %v432 = vsel %vm148, %v108, 0
  %v435 = vsel %vm148, %v109, 0
  %v438 = vsel %vm148, %v110, 0
  %v441 = vsel %vm148, %v111, 0
  %v444 = vsel %vm148, %v112, 0
  %v447 = vsel %vm148, %v113, 0
  %v450 = vsel %vm148, %v114, 0
  %v453 = vsel %vm148, %v115, 0
  %v456 = vsel %vm148, %v116, 0
  %v459 = vsel %vm148, %v117, 0
  %v462 = vsel %vm148, %v118, 0
  %v465 = vsel %vm148, %v119, 0
  %v468 = vsel %vm148, %v120, 0
  %v471 = vsel %vm148, %v121, 0
  %v474 = vsel %vm148, %v122, 0
  %v477 = vsel %vm148, %v123, 0
  %v480 = vsel %vm148, %v124, 0
  %v483 = vsel %vm148, %v125, 0
  %v486 = vsel %vm148, %v126, 0
  %v489 = vsel %vm148, %v127, 0
  %v492 = vsel %vm148, %v128, 0
  %v495 = vsel %vm148, %v129, 0
  %v498 = vsel %vm148, %v130, 0
  %v501 = vsel %vm148, %v131, 0
  %v504 = vsel %vm148, %v132, 0
  %v507 = vsel %vm148, %v133, 0
  %v510 = vsel %vm148, %v134, 0
  %v513 = vsel %vm148, %v135, 0
  %v516 = vsel %vm148, %v136, 0
  %v519 = vsel %vm148, %v137, 0
  %v522 = vsel %vm148, %v138, 0
  %vm524 = vcmask 1042432
  %v526 = vsel %vm524, %v140, 0
  %528 = vmatprep.subr.mxu0 0.0
  %529 = vmatpush1.msra.mxu0 %v139
  %530 = vmatprep.subr.mxu0 0.0
  %531 = vmatpush1.msra.mxu0 %v526
  %532 = vmatprep.subr.mxu0 0.0
  %533 = vmatpush1.msra.mxu0 0.0
  %534 = vmatprep.subr.mxu0 0.0
  %535 = vmatpush1.msra.mxu0 0.0
  %536 = vmatprep.subr.mxu0 0.0
  %537 = vmatpush1.msra.mxu0 0.0
  %538 = vmatprep.subr.mxu0 0.0
  %539 = vmatpush1.msra.mxu0 0.0
  %540 = vmatprep.subr.mxu0 0.0
  %541 = vmatpush1.msra.mxu0 0.0
  %542 = vmatprep.subr.mxu0 0.0
  %543 = vmatpush1.msra.mxu0 0.0
  %544 = vmatprep.subr.mxu0 0.0
  %545 = vmatpush1.msra.mxu0 0.0
  %546 = vmatprep.subr.mxu0 0.0
  %547 = vmatpush1.msra.mxu0 0.0
  %548 = vmatprep.subr.mxu0 0.0
  %549 = vmatpush1.msra.mxu0 0.0
  %550 = vmatprep.subr.mxu0 0.0
  %551 = vmatpush1.msra.mxu0 0.0
  %552 = vmatprep.subr.mxu0 0.0
  %553 = vmatpush1.msra.mxu0 0.0
  %554 = vmatprep.subr.mxu0 0.0
  %555 = vmatpush1.msra.mxu0 0.0
  %556 = vmatprep.subr.mxu0 0.0
  %557 = vmatpush1.msra.mxu0 0.0
  %558 = vmatprep.subr.mxu0 0.0
  %559 = vmatpush1.msra.mxu0 0.0
  %560 = vmatprep.subr.mxu0 0.0
  %561 = vmatpush1.msra.mxu0 0.0
  %562 = vmatprep.subr.mxu0 0.0
  %563 = vmatpush1.msra.mxu0 0.0
  %564 = vmatprep.subr.mxu0 0.0
  %565 = vmatpush1.msra.mxu0 0.0
  %566 = vmatprep.subr.mxu0 0.0
  %567 = vmatpush1.msra.mxu0 0.0
  %568 = vmatprep.subr.mxu0 0.0
  %569 = vmatpush1.msra.mxu0 0.0
  %570 = vmatprep.subr.mxu0 0.0
  %571 = vmatpush1.msra.mxu0 0.0
  %572 = vmatprep.subr.mxu0 0.0
  %573 = vmatpush1.msra.mxu0 0.0
  %574 = vmatprep.subr.mxu0 0.0
  %575 = vmatpush1.msra.mxu0 0.0
  %576 = vmatprep.subr.mxu0 0.0
  %577 = vmatpush1.msra.mxu0 0.0
  %578 = vmatprep.subr.mxu0 0.0
  %579 = vmatpush1.msra.mxu0 0.0
  %580 = vmatprep.subr.mxu0 0.0
  %581 = vmatpush1.msra.mxu0 0.0
  %582 = vmatprep.subr.mxu0 0.0
  %583 = vmatpush1.msra.mxu0 0.0
  %584 = vmatprep.subr.mxu0 0.0
  %585 = vmatpush1.msra.mxu0 0.0
  %586 = vmatprep.subr.mxu0 0.0
  %587 = vmatpush1.msra.mxu0 0.0
  %588 = vmatprep.subr.mxu0 0.0
  %589 = vmatpush1.msra.mxu0 0.0
  %590 = vmatprep.subr.mxu0 0.0
  %591 = vmatpush1.msra.mxu0 0.0
  %592 = vmatprep.mubr.f32.mxu0 0.0
  %593 = vmatmul.mubr.f32.gmra.mrb[0].mxu0 %v150
  %v594 = vpop.f32.mrb[0].mxu0
  %v595 = vadd.f32 %v146, %v594
  %v596 = vpop.f32.mrb[0].mxu0
  %597 = vmatprep.mubr.f32.mxu0 0.0
  %598 = vmatmul.mubr.f32.gmra.mrb[0].mxu0 %v153
  %v599 = vpop.f32.mrb[0].mxu0
  %v600 = vadd.f32 %v146, %v599
  %v601 = vpop.f32.mrb[0].mxu0
  %602 = vmatprep.mubr.f32.mxu0 0.0
  %603 = vmatmul.mubr.f32.gmra.mrb[0].mxu0 %v156
  %v604 = vpop.f32.mrb[0].mxu0
  %v605 = vadd.f32 %v146, %v604
  %v606 = vpop.f32.mrb[0].mxu0
  %607 = vmatprep.mubr.f32.mxu0 0.0
  %608 = vmatmul.mubr.f32.gmra.mrb[0].mxu0 %v159
  %v609 = vpop.f32.mrb[0].mxu0
  %v610 = vadd.f32 %v146, %v609
  %v611 = vpop.f32.mrb[0].mxu0
  %612 = vmatprep.mubr.f32.mxu0 0.0
  %613 = vmatmul.mubr.f32.gmra.mrb[0].mxu0 %v162
  %v614 = vpop.f32.mrb[0].mxu0
  %v615 = vadd.f32 %v146, %v614
  %v616 = vpop.f32.mrb[0].mxu0
  %617 = vmatprep.mubr.f32.mxu0 0.0
  %618 = vmatmul.mubr.f32.gmra.mrb[0].mxu0 %v165
  %v619 = vpop.f32.mrb[0].mxu0
  %v620 = vadd.f32 %v146, %v619
  %v621 = vpop.f32.mrb[0].mxu0
  %622 = vmatprep.mubr.f32.mxu0 0.0
  %623 = vmatmul.mubr.f32.gmra.mrb[0].mxu0 %v168
  %v624 = vpop.f32.mrb[0].mxu0
  %v625 = vadd.f32 %v146, %v624
  %v626 = vpop.f32.mrb[0].mxu0
  %627 = vmatprep.mubr.f32.mxu0 0.0
  %628 = vmatmul.mubr.f32.gmra.mrb[0].mxu0 %v171
  %v629 = vpop.f32.mrb[0].mxu0
  %v630 = vadd.f32 %v146, %v629
  %v631 = vpop.f32.mrb[0].mxu0
  %632 = vmatprep.mubr.f32.mxu0 0.0
  %633 = vmatmul.mubr.f32.gmra.mrb[0].mxu0 %v174
  %v634 = vpop.f32.mrb[0].mxu0
  %v635 = vadd.f32 %v146, %v634
  %v636 = vpop.f32.mrb[0].mxu0
  %637 = vmatprep.mubr.f32.mxu0 0.0
  %638 = vmatmul.mubr.f32.gmra.mrb[0].mxu0 %v177
  %v639 = vpop.f32.mrb[0].mxu0
  %v640 = vadd.f32 %v146, %v639
  %v641 = vpop.f32.mrb[0].mxu0
  %642 = vmatprep.mubr.f32.mxu0 0.0
  %643 = vmatmul.mubr.f32.gmra.mrb[0].mxu0 %v180
  %v644 = vpop.f32.mrb[0].mxu0
  %v645 = vadd.f32 %v146, %v644
  %v646 = vpop.f32.mrb[0].mxu0
  %647 = vmatprep.mubr.f32.mxu0 0.0
  %648 = vmatmul.mubr.f32.gmra.mrb[0].mxu0 %v183
  %v649 = vpop.f32.mrb[0].mxu0
  %v650 = vadd.f32 %v146, %v649
  %v651 = vpop.f32.mrb[0].mxu0
  %652 = vmatprep.mubr.f32.mxu0 0.0
  %653 = vmatmul.mubr.f32.gmra.mrb[0].mxu0 %v186
  %v654 = vpop.f32.mrb[0].mxu0
  %v655 = vadd.f32 %v146, %v654
  %v656 = vpop.f32.mrb[0].mxu0
  %657 = vmatprep.mubr.f32.mxu0 0.0
  %658 = vmatmul.mubr.f32.gmra.mrb[0].mxu0 %v189
  %v659 = vpop.f32.mrb[0].mxu0
  %v660 = vadd.f32 %v146, %v659
  %v661 = vpop.f32.mrb[0].mxu0
  %662 = vmatprep.mubr.f32.mxu0 0.0
  %663 = vmatmul.mubr.f32.gmra.mrb[0].mxu0 %v192
  %v664 = vpop.f32.mrb[0].mxu0
  %v665 = vadd.f32 %v146, %v664
  %v666 = vpop.f32.mrb[0].mxu0
  %667 = vmatprep.mubr.f32.mxu0 0.0
  %668 = vmatmul.mubr.f32.gmra.mrb[0].mxu0 %v195
  %v669 = vpop.f32.mrb[0].mxu0
  %v670 = vadd.f32 %v146, %v669
  %v671 = vpop.f32.mrb[0].mxu0
  %672 = vmatprep.mubr.f32.mxu0 0.0
  %673 = vmatmul.mubr.f32.gmra.mrb[0].mxu0 %v198
  %v674 = vpop.f32.mrb[0].mxu0
  %v675 = vadd.f32 %v146, %v674
  %v676 = vpop.f32.mrb[0].mxu0
  %677 = vmatprep.mubr.f32.mxu0 0.0
  %678 = vmatmul.mubr.f32.gmra.mrb[0].mxu0 %v201
  %v679 = vpop.f32.mrb[0].mxu0
  %v680 = vadd.f32 %v146, %v679
  %v681 = vpop.f32.mrb[0].mxu0
  %682 = vmatprep.mubr.f32.mxu0 0.0
  %683 = vmatmul.mubr.f32.gmra.mrb[0].mxu0 %v204
  %v684 = vpop.f32.mrb[0].mxu0
  %v685 = vadd.f32 %v146, %v684
  %v686 = vpop.f32.mrb[0].mxu0
  %687 = vmatprep.mubr.f32.mxu0 0.0
  %688 = vmatmul.mubr.f32.gmra.mrb[0].mxu0 %v207
  %v689 = vpop.f32.mrb[0].mxu0
  %v690 = vadd.f32 %v146, %v689
  %v691 = vpop.f32.mrb[0].mxu0
  %692 = vmatprep.mubr.f32.mxu0 0.0
  %693 = vmatmul.mubr.f32.gmra.mrb[0].mxu0 %v210
  %v694 = vpop.f32.mrb[0].mxu0
  %v695 = vadd.f32 %v146, %v694
  %v696 = vpop.f32.mrb[0].mxu0
  %697 = vmatprep.mubr.f32.mxu0 0.0
  %698 = vmatmul.mubr.f32.gmra.mrb[0].mxu0 %v213
  %v699 = vpop.f32.mrb[0].mxu0
  %v700 = vadd.f32 %v146, %v699
  %v701 = vpop.f32.mrb[0].mxu0
  %702 = vmatprep.mubr.f32.mxu0 0.0
  %703 = vmatmul.mubr.f32.gmra.mrb[0].mxu0 %v216
  %v704 = vpop.f32.mrb[0].mxu0
  %v705 = vadd.f32 %v146, %v704
  %v706 = vpop.f32.mrb[0].mxu0
  %707 = vmatprep.mubr.f32.mxu0 0.0
  %708 = vmatmul.mubr.f32.gmra.mrb[0].mxu0 %v219
  %v709 = vpop.f32.mrb[0].mxu0
  %v710 = vadd.f32 %v146, %v709
  %v711 = vpop.f32.mrb[0].mxu0
  %712 = vmatprep.mubr.f32.mxu0 0.0
  %713 = vmatmul.mubr.f32.gmra.mrb[0].mxu0 %v222
  %v714 = vpop.f32.mrb[0].mxu0
  %v715 = vadd.f32 %v146, %v714
  %v716 = vpop.f32.mrb[0].mxu0
  %717 = vmatprep.mubr.f32.mxu0 0.0
  %718 = vmatmul.mubr.f32.gmra.mrb[0].mxu0 %v225
  %v719 = vpop.f32.mrb[0].mxu0
  %v720 = vadd.f32 %v146, %v719
  %v721 = vpop.f32.mrb[0].mxu0
  %722 = vmatprep.mubr.f32.mxu0 0.0
  %723 = vmatmul.mubr.f32.gmra.mrb[0].mxu0 %v228
  %v724 = vpop.f32.mrb[0].mxu0
  %v725 = vadd.f32 %v146, %v724
  %v726 = vpop.f32.mrb[0].mxu0
  %727 = vmatprep.mubr.f32.mxu0 0.0
  %728 = vmatmul.mubr.f32.gmra.mrb[0].mxu0 %v231
  %v729 = vpop.f32.mrb[0].mxu0
  %v730 = vadd.f32 %v146, %v729
  %v731 = vpop.f32.mrb[0].mxu0
  %732 = vmatprep.mubr.f32.mxu0 0.0
  %733 = vmatmul.mubr.f32.gmra.mrb[0].mxu0 %v234
  %v734 = vpop.f32.mrb[0].mxu0
  %v735 = vadd.f32 %v146, %v734
  %v736 = vpop.f32.mrb[0].mxu0
  %737 = vmatprep.mubr.f32.mxu0 0.0
  %738 = vmatmul.mubr.f32.gmra.mrb[0].mxu0 %v237
  %v739 = vpop.f32.mrb[0].mxu0
  %v740 = vadd.f32 %v146, %v739
  %v741 = vpop.f32.mrb[0].mxu0
  %742 = vmatprep.mubr.f32.mxu0 0.0
  %743 = vmatmul.mubr.f32.gmra.mrb[0].mxu0 %v240
  %v744 = vpop.f32.mrb[0].mxu0
  %v745 = vadd.f32 %v146, %v744
  %v746 = vpop.f32.mrb[0].mxu0
  %747 = vmatprep.mubr.f32.mxu0 0.0
  %748 = vmatmul.mubr.f32.gmra.mrb[0].mxu0 %v243
  %v749 = vpop.f32.mrb[0].mxu0
  %v750 = vadd.f32 %v146, %v749
  %v751 = vpop.f32.mrb[0].mxu0
  %752 = vmatprep.mubr.f32.mxu0 0.0
  %753 = vmatmul.mubr.f32.gmra.mrb[0].mxu0 %v246
  %v754 = vpop.f32.mrb[0].mxu0
  %v755 = vadd.f32 %v146, %v754
  %v756 = vpop.f32.mrb[0].mxu0
  %757 = vmatprep.mubr.f32.mxu0 0.0
  %758 = vmatmul.mubr.f32.gmra.mrb[0].mxu0 %v249
  %v759 = vpop.f32.mrb[0].mxu0
  %v760 = vadd.f32 %v146, %v759
  %v761 = vpop.f32.mrb[0].mxu0
  %762 = vmatprep.mubr.f32.mxu0 0.0
  %763 = vmatmul.mubr.f32.gmra.mrb[0].mxu0 %v252
  %v764 = vpop.f32.mrb[0].mxu0
  %v765 = vadd.f32 %v146, %v764
  %v766 = vpop.f32.mrb[0].mxu0
  %767 = vmatprep.mubr.f32.mxu0 0.0
  %768 = vmatmul.mubr.f32.gmra.mrb[0].mxu0 %v255
  %v769 = vpop.f32.mrb[0].mxu0
  %v770 = vadd.f32 %v146, %v769
  %v771 = vpop.f32.mrb[0].mxu0
  %772 = vmatprep.mubr.f32.mxu0 0.0
  %773 = vmatmul.mubr.f32.gmra.mrb[0].mxu0 %v258
  %v774 = vpop.f32.mrb[0].mxu0
  %v775 = vadd.f32 %v146, %v774
  %v776 = vpop.f32.mrb[0].mxu0
  %777 = vmatprep.mubr.f32.mxu0 0.0
  %778 = vmatmul.mubr.f32.gmra.mrb[0].mxu0 %v261
  %v779 = vpop.f32.mrb[0].mxu0
  %v780 = vadd.f32 %v146, %v779
  %v781 = vpop.f32.mrb[0].mxu0
  %782 = vmatprep.mubr.f32.mxu0 0.0
  %783 = vmatmul.mubr.f32.gmra.mrb[0].mxu0 %v264
  %v784 = vpop.f32.mrb[0].mxu0
  %v785 = vadd.f32 %v146, %v784
  %v786 = vpop.f32.mrb[0].mxu0
  %787 = vmatprep.mubr.f32.mxu0 0.0
  %788 = vmatmul.mubr.f32.gmra.mrb[0].mxu0 %v267
  %v789 = vpop.f32.mrb[0].mxu0
  %v790 = vadd.f32 %v146, %v789
  %v791 = vpop.f32.mrb[0].mxu0
  %792 = vmatprep.mubr.f32.mxu0 0.0
  %793 = vmatmul.mubr.f32.gmra.mrb[0].mxu0 %v270
  %v794 = vpop.f32.mrb[0].mxu0
  %v795 = vadd.f32 %v146, %v794
  %v796 = vpop.f32.mrb[0].mxu0
  %797 = vmatprep.mubr.f32.mxu0 0.0
  %798 = vmatmul.mubr.f32.gmra.mrb[0].mxu0 %v273
  %v799 = vpop.f32.mrb[0].mxu0
  %v800 = vadd.f32 %v146, %v799
  %v801 = vpop.f32.mrb[0].mxu0
  %802 = vmatprep.mubr.f32.mxu0 0.0
  %803 = vmatmul.mubr.f32.gmra.mrb[0].mxu0 %v276
  %v804 = vpop.f32.mrb[0].mxu0
  %v805 = vadd.f32 %v146, %v804
  %v806 = vpop.f32.mrb[0].mxu0
  %807 = vmatprep.mubr.f32.mxu0 0.0
  %808 = vmatmul.mubr.f32.gmra.mrb[0].mxu0 %v279
  %v809 = vpop.f32.mrb[0].mxu0
  %v810 = vadd.f32 %v146, %v809
  %v811 = vpop.f32.mrb[0].mxu0
  %812 = vmatprep.mubr.f32.mxu0 0.0
  %813 = vmatmul.mubr.f32.gmra.mrb[0].mxu0 %v282
  %v814 = vpop.f32.mrb[0].mxu0
  %v815 = vadd.f32 %v146, %v814
  %v816 = vpop.f32.mrb[0].mxu0
  %817 = vmatprep.mubr.f32.mxu0 0.0
  %818 = vmatmul.mubr.f32.gmra.mrb[0].mxu0 %v285
  %v819 = vpop.f32.mrb[0].mxu0
  %v820 = vadd.f32 %v146, %v819
  %v821 = vpop.f32.mrb[0].mxu0
  %822 = vmatprep.mubr.f32.mxu0 0.0
  %823 = vmatmul.mubr.f32.gmra.mrb[0].mxu0 %v288
  %v824 = vpop.f32.mrb[0].mxu0
  %v825 = vadd.f32 %v146, %v824
  %v826 = vpop.f32.mrb[0].mxu0
  %827 = vmatprep.mubr.f32.mxu0 0.0
  %828 = vmatmul.mubr.f32.gmra.mrb[0].mxu0 %v291
  %v829 = vpop.f32.mrb[0].mxu0
  %v830 = vadd.f32 %v146, %v829
  %v831 = vpop.f32.mrb[0].mxu0
  %832 = vmatprep.mubr.f32.mxu0 0.0
  %833 = vmatmul.mubr.f32.gmra.mrb[0].mxu0 %v294
  %v834 = vpop.f32.mrb[0].mxu0
  %v835 = vadd.f32 %v146, %v834
  %v836 = vpop.f32.mrb[0].mxu0
  %837 = vmatprep.mubr.f32.mxu0 0.0
  %838 = vmatmul.mubr.f32.gmra.mrb[0].mxu0 %v297
  %v839 = vpop.f32.mrb[0].mxu0
  %v840 = vadd.f32 %v146, %v839
  %v841 = vpop.f32.mrb[0].mxu0
  %842 = vmatprep.mubr.f32.mxu0 0.0
  %843 = vmatmul.mubr.f32.gmra.mrb[0].mxu0 %v300
  %v844 = vpop.f32.mrb[0].mxu0
  %v845 = vadd.f32 %v146, %v844
  %v846 = vpop.f32.mrb[0].mxu0
  %847 = vmatprep.mubr.f32.mxu0 0.0
  %848 = vmatmul.mubr.f32.gmra.mrb[0].mxu0 %v303
  %v849 = vpop.f32.mrb[0].mxu0
  %v850 = vadd.f32 %v146, %v849
  %v851 = vpop.f32.mrb[0].mxu0
  %852 = vmatprep.mubr.f32.mxu0 0.0
  %853 = vmatmul.mubr.f32.gmra.mrb[0].mxu0 %v306
  %v854 = vpop.f32.mrb[0].mxu0
  %v855 = vadd.f32 %v146, %v854
  %v856 = vpop.f32.mrb[0].mxu0
  %857 = vmatprep.mubr.f32.mxu0 0.0
  %858 = vmatmul.mubr.f32.gmra.mrb[0].mxu0 %v309
  %v859 = vpop.f32.mrb[0].mxu0
  %v860 = vadd.f32 %v146, %v859
  %v861 = vpop.f32.mrb[0].mxu0
  %862 = vmatprep.mubr.f32.mxu0 0.0
  %863 = vmatmul.mubr.f32.gmra.mrb[0].mxu0 %v312
  %v864 = vpop.f32.mrb[0].mxu0
  %v865 = vadd.f32 %v146, %v864
  %v866 = vpop.f32.mrb[0].mxu0
  %867 = vmatprep.mubr.f32.mxu0 0.0
  %868 = vmatmul.mubr.f32.gmra.mrb[0].mxu0 %v315
  %v869 = vpop.f32.mrb[0].mxu0
  %v870 = vadd.f32 %v146, %v869
  %v871 = vpop.f32.mrb[0].mxu0
  %872 = vmatprep.mubr.f32.mxu0 0.0
  %873 = vmatmul.mubr.f32.gmra.mrb[0].mxu0 %v318
  %v874 = vpop.f32.mrb[0].mxu0
  %v875 = vadd.f32 %v146, %v874
  %v876 = vpop.f32.mrb[0].mxu0
  %877 = vmatprep.mubr.f32.mxu0 0.0
  %878 = vmatmul.mubr.f32.gmra.mrb[0].mxu0 %v321
  %v879 = vpop.f32.mrb[0].mxu0
  %v880 = vadd.f32 %v146, %v879
  %v881 = vpop.f32.mrb[0].mxu0
  %882 = vmatprep.mubr.f32.mxu0 0.0
  %883 = vmatmul.mubr.f32.gmra.mrb[0].mxu0 %v324
  %v884 = vpop.f32.mrb[0].mxu0
  %v885 = vadd.f32 %v146, %v884
  %v886 = vpop.f32.mrb[0].mxu0
  %887 = vmatprep.mubr.f32.mxu0 0.0
  %888 = vmatmul.mubr.f32.gmra.mrb[0].mxu0 %v327
  %v889 = vpop.f32.mrb[0].mxu0
  %v890 = vadd.f32 %v146, %v889
  %v891 = vpop.f32.mrb[0].mxu0
  %892 = vmatprep.mubr.f32.mxu0 0.0
  %893 = vmatmul.mubr.f32.gmra.mrb[0].mxu0 %v330
  %v894 = vpop.f32.mrb[0].mxu0
  %v895 = vadd.f32 %v146, %v894
  %v896 = vpop.f32.mrb[0].mxu0
  %897 = vmatprep.mubr.f32.mxu0 0.0
  %898 = vmatmul.mubr.f32.gmra.mrb[0].mxu0 %v333
  %v899 = vpop.f32.mrb[0].mxu0
  %v900 = vadd.f32 %v146, %v899
  %v901 = vpop.f32.mrb[0].mxu0
  %902 = vmatprep.mubr.f32.mxu0 0.0
  %903 = vmatmul.mubr.f32.gmra.mrb[0].mxu0 %v336
  %v904 = vpop.f32.mrb[0].mxu0
  %v905 = vadd.f32 %v146, %v904
  %v906 = vpop.f32.mrb[0].mxu0
  %907 = vmatprep.mubr.f32.mxu0 0.0
  %908 = vmatmul.mubr.f32.gmra.mrb[0].mxu0 %v339
  %v909 = vpop.f32.mrb[0].mxu0
  %v910 = vadd.f32 %v146, %v909
  %v911 = vpop.f32.mrb[0].mxu0
  %912 = vmatprep.mubr.f32.mxu0 0.0
  %913 = vmatmul.mubr.f32.gmra.mrb[0].mxu0 %v342
  %v914 = vpop.f32.mrb[0].mxu0
  %v915 = vadd.f32 %v146, %v914
  %v916 = vpop.f32.mrb[0].mxu0
  %917 = vmatprep.mubr.f32.mxu0 0.0
  %918 = vmatmul.mubr.f32.gmra.mrb[0].mxu0 %v345
  %v919 = vpop.f32.mrb[0].mxu0
  %v920 = vadd.f32 %v146, %v919
  %v921 = vpop.f32.mrb[0].mxu0
  %922 = vmatprep.mubr.f32.mxu0 0.0
  %923 = vmatmul.mubr.f32.gmra.mrb[0].mxu0 %v348
  %v924 = vpop.f32.mrb[0].mxu0
  %v925 = vadd.f32 %v146, %v924
  %v926 = vpop.f32.mrb[0].mxu0
  %927 = vmatprep.mubr.f32.mxu0 0.0
  %928 = vmatmul.mubr.f32.gmra.mrb[0].mxu0 %v351
  %v929 = vpop.f32.mrb[0].mxu0
  %v930 = vadd.f32 %v146, %v929
  %v931 = vpop.f32.mrb[0].mxu0
  %932 = vmatprep.mubr.f32.mxu0 0.0
  %933 = vmatmul.mubr.f32.gmra.mrb[0].mxu0 %v354
  %v934 = vpop.f32.mrb[0].mxu0
  %v935 = vadd.f32 %v146, %v934
  %v936 = vpop.f32.mrb[0].mxu0
  %937 = vmatprep.mubr.f32.mxu0 0.0
  %938 = vmatmul.mubr.f32.gmra.mrb[0].mxu0 %v357
  %v939 = vpop.f32.mrb[0].mxu0
  %v940 = vadd.f32 %v146, %v939
  %v941 = vpop.f32.mrb[0].mxu0
  %942 = vmatprep.mubr.f32.mxu0 0.0
  %943 = vmatmul.mubr.f32.gmra.mrb[0].mxu0 %v360
  %v944 = vpop.f32.mrb[0].mxu0
  %v945 = vadd.f32 %v146, %v944
  %v946 = vpop.f32.mrb[0].mxu0
  %947 = vmatprep.mubr.f32.mxu0 0.0
  %948 = vmatmul.mubr.f32.gmra.mrb[0].mxu0 %v363
  %v949 = vpop.f32.mrb[0].mxu0
  %v950 = vadd.f32 %v146, %v949
  %v951 = vpop.f32.mrb[0].mxu0
  %952 = vmatprep.mubr.f32.mxu0 0.0
  %953 = vmatmul.mubr.f32.gmra.mrb[0].mxu0 %v366
  %v954 = vpop.f32.mrb[0].mxu0
  %v955 = vadd.f32 %v146, %v954
  %v956 = vpop.f32.mrb[0].mxu0
  %957 = vmatprep.mubr.f32.mxu0 0.0
  %958 = vmatmul.mubr.f32.gmra.mrb[0].mxu0 %v369
  %v959 = vpop.f32.mrb[0].mxu0
  %v960 = vadd.f32 %v146, %v959
  %v961 = vpop.f32.mrb[0].mxu0
  %962 = vmatprep.mubr.f32.mxu0 0.0
  %963 = vmatmul.mubr.f32.gmra.mrb[0].mxu0 %v372
  %v964 = vpop.f32.mrb[0].mxu0
  %v965 = vadd.f32 %v146, %v964
  %v966 = vpop.f32.mrb[0].mxu0
  %967 = vmatprep.mubr.f32.mxu0 0.0
  %968 = vmatmul.mubr.f32.gmra.mrb[0].mxu0 %v375
  %v969 = vpop.f32.mrb[0].mxu0
  %v970 = vadd.f32 %v146, %v969
  %v971 = vpop.f32.mrb[0].mxu0
  %972 = vmatprep.mubr.f32.mxu0 0.0
  %973 = vmatmul.mubr.f32.gmra.mrb[0].mxu0 %v378
  %v974 = vpop.f32.mrb[0].mxu0
  %v975 = vadd.f32 %v146, %v974
  %v976 = vpop.f32.mrb[0].mxu0
  %977 = vmatprep.mubr.f32.mxu0 0.0
  %978 = vmatmul.mubr.f32.gmra.mrb[0].mxu0 %v381
  %v979 = vpop.f32.mrb[0].mxu0
  %v980 = vadd.f32 %v146, %v979
  %v981 = vpop.f32.mrb[0].mxu0
  %982 = vmatprep.mubr.f32.mxu0 0.0
  %983 = vmatmul.mubr.f32.gmra.mrb[0].mxu0 %v384
  %v984 = vpop.f32.mrb[0].mxu0
  %v985 = vadd.f32 %v146, %v984
  %v986 = vpop.f32.mrb[0].mxu0
  %987 = vmatprep.mubr.f32.mxu0 0.0
  %988 = vmatmul.mubr.f32.gmra.mrb[0].mxu0 %v387
  %v989 = vpop.f32.mrb[0].mxu0
  %v990 = vadd.f32 %v146, %v989
  %v991 = vpop.f32.mrb[0].mxu0
  %992 = vmatprep.mubr.f32.mxu0 0.0
  %993 = vmatmul.mubr.f32.gmra.mrb[0].mxu0 %v390
  %v994 = vpop.f32.mrb[0].mxu0
  %v995 = vadd.f32 %v146, %v994
  %v996 = vpop.f32.mrb[0].mxu0
  %997 = vmatprep.mubr.f32.mxu0 0.0
  %998 = vmatmul.mubr.f32.gmra.mrb[0].mxu0 %v393
  %v999 = vpop.f32.mrb[0].mxu0
  %v1000 = vadd.f32 %v146, %v999
  %v1001 = vpop.f32.mrb[0].mxu0
  %1002 = vmatprep.mubr.f32.mxu0 0.0
  %1003 = vmatmul.mubr.f32.gmra.mrb[0].mxu0 %v396
  %v1004 = vpop.f32.mrb[0].mxu0
  %v1005 = vadd.f32 %v146, %v1004
  %v1006 = vpop.f32.mrb[0].mxu0
  %1007 = vmatprep.mubr.f32.mxu0 0.0
  %1008 = vmatmul.mubr.f32.gmra.mrb[0].mxu0 %v399
  %v1009 = vpop.f32.mrb[0].mxu0
  %v1010 = vadd.f32 %v146, %v1009
  %v1011 = vpop.f32.mrb[0].mxu0
  %1012 = vmatprep.mubr.f32.mxu0 0.0
  %1013 = vmatmul.mubr.f32.gmra.mrb[0].mxu0 %v402
  %v1014 = vpop.f32.mrb[0].mxu0
  %v1015 = vadd.f32 %v146, %v1014
  %v1016 = vpop.f32.mrb[0].mxu0
  %1017 = vmatprep.mubr.f32.mxu0 0.0
  %1018 = vmatmul.mubr.f32.gmra.mrb[0].mxu0 %v405
  %v1019 = vpop.f32.mrb[0].mxu0
  %v1020 = vadd.f32 %v146, %v1019
  %v1021 = vpop.f32.mrb[0].mxu0
  %1022 = vmatprep.mubr.f32.mxu0 0.0
  %1023 = vmatmul.mubr.f32.gmra.mrb[0].mxu0 %v408
  %v1024 = vpop.f32.mrb[0].mxu0
  %v1025 = vadd.f32 %v146, %v1024
  %v1026 = vpop.f32.mrb[0].mxu0
  %1027 = vmatprep.mubr.f32.mxu0 0.0
  %1028 = vmatmul.mubr.f32.gmra.mrb[0].mxu0 %v411
  %v1029 = vpop.f32.mrb[0].mxu0
  %v1030 = vadd.f32 %v146, %v1029
  %v1031 = vpop.f32.mrb[0].mxu0
  %1032 = vmatprep.mubr.f32.mxu0 0.0
  %1033 = vmatmul.mubr.f32.gmra.mrb[0].mxu0 %v414
  %v1034 = vpop.f32.mrb[0].mxu0
  %v1035 = vadd.f32 %v146, %v1034
  %v1036 = vpop.f32.mrb[0].mxu0
  %1037 = vmatprep.mubr.f32.mxu0 0.0
  %1038 = vmatmul.mubr.f32.gmra.mrb[0].mxu0 %v417
  %v1039 = vpop.f32.mrb[0].mxu0
  %v1040 = vadd.f32 %v146, %v1039
  %v1041 = vpop.f32.mrb[0].mxu0
  %1042 = vmatprep.mubr.f32.mxu0 0.0
  %1043 = vmatmul.mubr.f32.gmra.mrb[0].mxu0 %v420
  %v1044 = vpop.f32.mrb[0].mxu0
  %v1045 = vadd.f32 %v146, %v1044
  %v1046 = vpop.f32.mrb[0].mxu0
  %1047 = vmatprep.mubr.f32.mxu0 0.0
  %1048 = vmatmul.mubr.f32.gmra.mrb[0].mxu0 %v423
  %v1049 = vpop.f32.mrb[0].mxu0
  %v1050 = vadd.f32 %v146, %v1049
  %v1051 = vpop.f32.mrb[0].mxu0
  %1052 = vmatprep.mubr.f32.mxu0 0.0
  %1053 = vmatmul.mubr.f32.gmra.mrb[0].mxu0 %v426
  %v1054 = vpop.f32.mrb[0].mxu0
  %v1055 = vadd.f32 %v146, %v1054
  %v1056 = vpop.f32.mrb[0].mxu0
  %1057 = vmatprep.mubr.f32.mxu0 0.0
  %1058 = vmatmul.mubr.f32.gmra.mrb[0].mxu0 %v429
  %v1059 = vpop.f32.mrb[0].mxu0
  %v1060 = vadd.f32 %v146, %v1059
  %v1061 = vpop.f32.mrb[0].mxu0
  %1062 = vmatprep.mubr.f32.mxu0 0.0
  %1063 = vmatmul.mubr.f32.gmra.mrb[0].mxu0 %v432
  %v1064 = vpop.f32.mrb[0].mxu0
  %v1065 = vadd.f32 %v146, %v1064
  %v1066 = vpop.f32.mrb[0].mxu0
  %1067 = vmatprep.mubr.f32.mxu0 0.0
  %1068 = vmatmul.mubr.f32.gmra.mrb[0].mxu0 %v435
  %v1069 = vpop.f32.mrb[0].mxu0
  %v1070 = vadd.f32 %v146, %v1069
  %v1071 = vpop.f32.mrb[0].mxu0
  %1072 = vmatprep.mubr.f32.mxu0 0.0
  %1073 = vmatmul.mubr.f32.gmra.mrb[0].mxu0 %v438
  %v1074 = vpop.f32.mrb[0].mxu0
  %v1075 = vadd.f32 %v146, %v1074
  %v1076 = vpop.f32.mrb[0].mxu0
  %1077 = vmatprep.mubr.f32.mxu0 0.0
  %1078 = vmatmul.mubr.f32.gmra.mrb[0].mxu0 %v441
  %v1079 = vpop.f32.mrb[0].mxu0
  %v1080 = vadd.f32 %v146, %v1079
  %v1081 = vpop.f32.mrb[0].mxu0
  %1082 = vmatprep.mubr.f32.mxu0 0.0
  %1083 = vmatmul.mubr.f32.gmra.mrb[0].mxu0 %v444
  %v1084 = vpop.f32.mrb[0].mxu0
  %v1085 = vadd.f32 %v146, %v1084
  %v1086 = vpop.f32.mrb[0].mxu0
  %1087 = vmatprep.mubr.f32.mxu0 0.0
  %1088 = vmatmul.mubr.f32.gmra.mrb[0].mxu0 %v447
  %v1089 = vpop.f32.mrb[0].mxu0
  %v1090 = vadd.f32 %v146, %v1089
  %v1091 = vpop.f32.mrb[0].mxu0
  %1092 = vmatprep.mubr.f32.mxu0 0.0
  %1093 = vmatmul.mubr.f32.gmra.mrb[0].mxu0 %v450
  %v1094 = vpop.f32.mrb[0].mxu0
  %v1095 = vadd.f32 %v146, %v1094
  %v1096 = vpop.f32.mrb[0].mxu0
  %1097 = vmatprep.mubr.f32.mxu0 0.0
  %1098 = vmatmul.mubr.f32.gmra.mrb[0].mxu0 %v453
  %v1099 = vpop.f32.mrb[0].mxu0
  %v1100 = vadd.f32 %v146, %v1099
  %v1101 = vpop.f32.mrb[0].mxu0
  %1102 = vmatprep.mubr.f32.mxu0 0.0
  %1103 = vmatmul.mubr.f32.gmra.mrb[0].mxu0 %v456
  %v1104 = vpop.f32.mrb[0].mxu0
  %v1105 = vadd.f32 %v146, %v1104
  %v1106 = vpop.f32.mrb[0].mxu0
  %1107 = vmatprep.mubr.f32.mxu0 0.0
  %1108 = vmatmul.mubr.f32.gmra.mrb[0].mxu0 %v459
  %v1109 = vpop.f32.mrb[0].mxu0
  %v1110 = vadd.f32 %v146, %v1109
  %v1111 = vpop.f32.mrb[0].mxu0
  %1112 = vmatprep.mubr.f32.mxu0 0.0
  %1113 = vmatmul.mubr.f32.gmra.mrb[0].mxu0 %v462
  %v1114 = vpop.f32.mrb[0].mxu0
  %v1115 = vadd.f32 %v146, %v1114
  %v1116 = vpop.f32.mrb[0].mxu0
  %1117 = vmatprep.mubr.f32.mxu0 0.0
  %1118 = vmatmul.mubr.f32.gmra.mrb[0].mxu0 %v465
  %v1119 = vpop.f32.mrb[0].mxu0
  %v1120 = vadd.f32 %v146, %v1119
  %v1121 = vpop.f32.mrb[0].mxu0
  %1122 = vmatprep.mubr.f32.mxu0 0.0
  %1123 = vmatmul.mubr.f32.gmra.mrb[0].mxu0 %v468
  %v1124 = vpop.f32.mrb[0].mxu0
  %v1125 = vadd.f32 %v146, %v1124
  %v1126 = vpop.f32.mrb[0].mxu0
  %1127 = vmatprep.mubr.f32.mxu0 0.0
  %1128 = vmatmul.mubr.f32.gmra.mrb[0].mxu0 %v471
  %v1129 = vpop.f32.mrb[0].mxu0
  %v1130 = vadd.f32 %v146, %v1129
  %v1131 = vpop.f32.mrb[0].mxu0
  %1132 = vmatprep.mubr.f32.mxu0 0.0
  %1133 = vmatmul.mubr.f32.gmra.mrb[0].mxu0 %v474
  %v1134 = vpop.f32.mrb[0].mxu0
  %v1135 = vadd.f32 %v146, %v1134
  %v1136 = vpop.f32.mrb[0].mxu0
  %1137 = vmatprep.mubr.f32.mxu0 0.0
  %1138 = vmatmul.mubr.f32.gmra.mrb[0].mxu0 %v477
  %v1139 = vpop.f32.mrb[0].mxu0
  %v1140 = vadd.f32 %v146, %v1139
  %v1141 = vpop.f32.mrb[0].mxu0
  %1142 = vmatprep.mubr.f32.mxu0 0.0
  %1143 = vmatmul.mubr.f32.gmra.mrb[0].mxu0 %v480
  %v1144 = vpop.f32.mrb[0].mxu0
  %v1145 = vadd.f32 %v146, %v1144
  %v1146 = vpop.f32.mrb[0].mxu0
  %1147 = vmatprep.mubr.f32.mxu0 0.0
  %1148 = vmatmul.mubr.f32.gmra.mrb[0].mxu0 %v483
  %v1149 = vpop.f32.mrb[0].mxu0
  %v1150 = vadd.f32 %v146, %v1149
  %v1151 = vpop.f32.mrb[0].mxu0
  %1152 = vmatprep.mubr.f32.mxu0 0.0
  %1153 = vmatmul.mubr.f32.gmra.mrb[0].mxu0 %v486
  %v1154 = vpop.f32.mrb[0].mxu0
  %v1155 = vadd.f32 %v146, %v1154
  %v1156 = vpop.f32.mrb[0].mxu0
  %1157 = vmatprep.mubr.f32.mxu0 0.0
  %1158 = vmatmul.mubr.f32.gmra.mrb[0].mxu0 %v489
  %v1159 = vpop.f32.mrb[0].mxu0
  %v1160 = vadd.f32 %v146, %v1159
  %v1161 = vpop.f32.mrb[0].mxu0
  %1162 = vmatprep.mubr.f32.mxu0 0.0
  %1163 = vmatmul.mubr.f32.gmra.mrb[0].mxu0 %v492
  %v1164 = vpop.f32.mrb[0].mxu0
  %v1165 = vadd.f32 %v146, %v1164
  %v1166 = vpop.f32.mrb[0].mxu0
  %1167 = vmatprep.mubr.f32.mxu0 0.0
  %1168 = vmatmul.mubr.f32.gmra.mrb[0].mxu0 %v495
  %v1169 = vpop.f32.mrb[0].mxu0
  %v1170 = vadd.f32 %v146, %v1169
  %v1171 = vpop.f32.mrb[0].mxu0
  %1172 = vmatprep.mubr.f32.mxu0 0.0
  %1173 = vmatmul.mubr.f32.gmra.mrb[0].mxu0 %v498
  %v1174 = vpop.f32.mrb[0].mxu0
  %v1175 = vadd.f32 %v146, %v1174
  %v1176 = vpop.f32.mrb[0].mxu0
  %1177 = vmatprep.mubr.f32.mxu0 0.0
  %1178 = vmatmul.mubr.f32.gmra.mrb[0].mxu0 %v501
  %v1179 = vpop.f32.mrb[0].mxu0
  %v1180 = vadd.f32 %v146, %v1179
  %v1181 = vpop.f32.mrb[0].mxu0
  %1182 = vmatprep.mubr.f32.mxu0 0.0
  %1183 = vmatmul.mubr.f32.gmra.mrb[0].mxu0 %v504
  %v1184 = vpop.f32.mrb[0].mxu0
  %v1185 = vadd.f32 %v146, %v1184
  %v1186 = vpop.f32.mrb[0].mxu0
  %1187 = vmatprep.mubr.f32.mxu0 0.0
  %1188 = vmatmul.mubr.f32.gmra.mrb[0].mxu0 %v507
  %v1189 = vpop.f32.mrb[0].mxu0
  %v1190 = vadd.f32 %v146, %v1189
  %v1191 = vpop.f32.mrb[0].mxu0
  %1192 = vmatprep.mubr.f32.mxu0 0.0
  %1193 = vmatmul.mubr.f32.gmra.mrb[0].mxu0 %v510
  %v1194 = vpop.f32.mrb[0].mxu0
  %v1195 = vadd.f32 %v146, %v1194
  %v1196 = vpop.f32.mrb[0].mxu0
  %1197 = vmatprep.mubr.f32.mxu0 0.0
  %1198 = vmatmul.mubr.f32.gmra.mrb[0].mxu0 %v513
  %v1199 = vpop.f32.mrb[0].mxu0
  %v1200 = vadd.f32 %v146, %v1199
  %v1201 = vpop.f32.mrb[0].mxu0
  %1202 = vmatprep.mubr.f32.mxu0 0.0
  %1203 = vmatmul.mubr.f32.gmra.mrb[0].mxu0 %v516
  %v1204 = vpop.f32.mrb[0].mxu0
  %v1205 = vadd.f32 %v146, %v1204
  %v1206 = vpop.f32.mrb[0].mxu0
  %1207 = vmatprep.mubr.f32.mxu0 0.0
  %1208 = vmatmul.mubr.f32.gmra.mrb[0].mxu0 %v519
  %v1209 = vpop.f32.mrb[0].mxu0
  %v1210 = vadd.f32 %v146, %v1209
  %v1211 = vpop.f32.mrb[0].mxu0
  %1212 = vmatprep.mubr.f32.mxu0 0.0
  %1213 = vmatmul.mubr.f32.gmra.mrb[0].mxu0 %v522
  %v1214 = vpop.f32.mrb[0].mxu0
  %v1215 = vadd.f32 %v146, %v1214
  %v1216 = vpop.f32.mrb[0].mxu0
  %1217 = vdwg.mxu0
  %v1218 = vsub.f32 0.0, %v595
  %v1219 = vsub.f32 0.0, %v600
  %v1220 = vsub.f32 0.0, %v605
  %v1221 = vsub.f32 0.0, %v610
  %v1222 = vsub.f32 0.0, %v615
  %v1223 = vsub.f32 0.0, %v620
  %v1224 = vsub.f32 0.0, %v625
  %v1225 = vsub.f32 0.0, %v630
  %v1226 = vsub.f32 0.0, %v635
  %v1227 = vsub.f32 0.0, %v640
  %v1228 = vsub.f32 0.0, %v645
  %v1229 = vsub.f32 0.0, %v650
  %v1230 = vsub.f32 0.0, %v655
  %v1231 = vsub.f32 0.0, %v660
  %v1232 = vsub.f32 0.0, %v665
  %v1233 = vsub.f32 0.0, %v670
  %v1234 = vsub.f32 0.0, %v675
  %v1235 = vsub.f32 0.0, %v680
  %v1236 = vsub.f32 0.0, %v685
  %v1237 = vsub.f32 0.0, %v690
  %v1238 = vsub.f32 0.0, %v695
  %v1239 = vsub.f32 0.0, %v700
  %v1240 = vsub.f32 0.0, %v705
  %v1241 = vsub.f32 0.0, %v710
  %v1242 = vsub.f32 0.0, %v715
  %v1243 = vsub.f32 0.0, %v720
  %v1244 = vsub.f32 0.0, %v725
  %v1245 = vsub.f32 0.0, %v730
  %v1246 = vsub.f32 0.0, %v735
  %v1247 = vsub.f32 0.0, %v740
  %v1248 = vsub.f32 0.0, %v745
  %v1249 = vsub.f32 0.0, %v750
  %v1250 = vsub.f32 0.0, %v755
  %v1251 = vsub.f32 0.0, %v760
  %v1252 = vsub.f32 0.0, %v765
  %v1253 = vsub.f32 0.0, %v770
  %v1254 = vsub.f32 0.0, %v775
  %v1255 = vsub.f32 0.0, %v780
  %v1256 = vsub.f32 0.0, %v785
  %v1257 = vsub.f32 0.0, %v790
  %v1258 = vsub.f32 0.0, %v795
  %v1259 = vsub.f32 0.0, %v800
  %v1260 = vsub.f32 0.0, %v805
  %v1261 = vsub.f32 0.0, %v810
  %v1262 = vsub.f32 0.0, %v815
  %v1263 = vsub.f32 0.0, %v820
  %v1264 = vsub.f32 0.0, %v825
  %v1265 = vsub.f32 0.0, %v830
  %v1266 = vsub.f32 0.0, %v835
  %v1267 = vsub.f32 0.0, %v840
  %v1268 = vsub.f32 0.0, %v845
  %v1269 = vsub.f32 0.0, %v850
  %v1270 = vsub.f32 0.0, %v855
  %v1271 = vsub.f32 0.0, %v860
  %v1272 = vsub.f32 0.0, %v865
  %v1273 = vsub.f32 0.0, %v870
  %v1274 = vsub.f32 0.0, %v875
  %v1275 = vsub.f32 0.0, %v880
  %v1276 = vsub.f32 0.0, %v885
  %v1277 = vsub.f32 0.0, %v890
  %v1278 = vsub.f32 0.0, %v895
  %v1279 = vsub.f32 0.0, %v900
  %v1280 = vsub.f32 0.0, %v905
  %v1281 = vsub.f32 0.0, %v910
  %v1282 = vsub.f32 0.0, %v915
  %v1283 = vsub.f32 0.0, %v920
  %v1284 = vsub.f32 0.0, %v925
  %v1285 = vsub.f32 0.0, %v930
  %v1286 = vsub.f32 0.0, %v935
  %v1287 = vsub.f32 0.0, %v940
  %v1288 = vsub.f32 0.0, %v945
  %v1289 = vsub.f32 0.0, %v950
  %v1290 = vsub.f32 0.0, %v955
  %v1291 = vsub.f32 0.0, %v960
  %v1292 = vsub.f32 0.0, %v965
  %v1293 = vsub.f32 0.0, %v970
  %v1294 = vsub.f32 0.0, %v975
  %v1295 = vsub.f32 0.0, %v980
  %v1296 = vsub.f32 0.0, %v985
  %v1297 = vsub.f32 0.0, %v990
  %v1298 = vsub.f32 0.0, %v995
  %v1299 = vsub.f32 0.0, %v1000
  %v1300 = vsub.f32 0.0, %v1005
  %v1301 = vsub.f32 0.0, %v1010
  %v1302 = vsub.f32 0.0, %v1015
  %v1303 = vsub.f32 0.0, %v1020
  %v1304 = vsub.f32 0.0, %v1025
  %v1305 = vsub.f32 0.0, %v1030
  %v1306 = vsub.f32 0.0, %v1035
  %v1307 = vsub.f32 0.0, %v1040
  %v1308 = vsub.f32 0.0, %v1045
  %v1309 = vsub.f32 0.0, %v1050
  %v1310 = vsub.f32 0.0, %v1055
  %v1311 = vsub.f32 0.0, %v1060
  %v1312 = vsub.f32 0.0, %v1065
  %v1313 = vsub.f32 0.0, %v1070
  %v1314 = vsub.f32 0.0, %v1075
  %v1315 = vsub.f32 0.0, %v1080
  %v1316 = vsub.f32 0.0, %v1085
  %v1317 = vsub.f32 0.0, %v1090
  %v1318 = vsub.f32 0.0, %v1095
  %v1319 = vsub.f32 0.0, %v1100
  %v1320 = vsub.f32 0.0, %v1105
  %v1321 = vsub.f32 0.0, %v1110
  %v1322 = vsub.f32 0.0, %v1115
  %v1323 = vsub.f32 0.0, %v1120
  %v1324 = vsub.f32 0.0, %v1125
  %v1325 = vsub.f32 0.0, %v1130
  %v1326 = vsub.f32 0.0, %v1135
  %v1327 = vsub.f32 0.0, %v1140
  %v1328 = vsub.f32 0.0, %v1145
  %v1329 = vsub.f32 0.0, %v1150
  %v1330 = vsub.f32 0.0, %v1155
  %v1331 = vsub.f32 0.0, %v1160
  %v1332 = vsub.f32 0.0, %v1165
  %v1333 = vsub.f32 0.0, %v1170
  %v1334 = vsub.f32 0.0, %v1175
  %v1335 = vsub.f32 0.0, %v1180
  %v1336 = vsub.f32 0.0, %v1185
  %v1337 = vsub.f32 0.0, %v1190
  %v1338 = vsub.f32 0.0, %v1195
  %v1339 = vsub.f32 0.0, %v1200
  %v1340 = vsub.f32 0.0, %v1205
  %v1341 = vsub.f32 0.0, %v1210
  %v1342 = vsub.f32 0.0, %v1215
  %v1343 = vmul.f32 %v1218, 1.442695
  %v1344 = vpow.pop %v1343
  %v1345 = vmul.f32 %v1219, 1.442695
  %v1346 = vpow.pop %v1345
  %v1347 = vmul.f32 %v1220, 1.442695
  %v1348 = vpow.pop %v1347
  %v1349 = vmul.f32 %v1221, 1.442695
  %v1350 = vpow.pop %v1349
  %v1351 = vmul.f32 %v1222, 1.442695
  %v1352 = vpow.pop %v1351
  %v1353 = vmul.f32 %v1223, 1.442695
  %v1354 = vpow.pop %v1353
  %v1355 = vmul.f32 %v1224, 1.442695
  %v1356 = vpow.pop %v1355
  %v1357 = vmul.f32 %v1225, 1.442695
  %v1358 = vpow.pop %v1357
  %v1359 = vmul.f32 %v1226, 1.442695
  %v1360 = vpow.pop %v1359
  %v1361 = vmul.f32 %v1227, 1.442695
  %v1362 = vpow.pop %v1361
  %v1363 = vmul.f32 %v1228, 1.442695
  %v1364 = vpow.pop %v1363
  %v1365 = vmul.f32 %v1229, 1.442695
  %v1366 = vpow.pop %v1365
  %v1367 = vmul.f32 %v1230, 1.442695
  %v1368 = vpow.pop %v1367
  %v1369 = vmul.f32 %v1231, 1.442695
  %v1370 = vpow.pop %v1369
  %v1371 = vmul.f32 %v1232, 1.442695
  %v1372 = vpow.pop %v1371
  %v1373 = vmul.f32 %v1233, 1.442695
  %v1374 = vpow.pop %v1373
  %v1375 = vmul.f32 %v1234, 1.442695
  %v1376 = vpow.pop %v1375
  %v1377 = vmul.f32 %v1235, 1.442695
  %v1378 = vpow.pop %v1377
  %v1379 = vmul.f32 %v1236, 1.442695
  %v1380 = vpow.pop %v1379
  %v1381 = vmul.f32 %v1237, 1.442695
  %v1382 = vpow.pop %v1381
  %v1383 = vmul.f32 %v1238, 1.442695
  %v1384 = vpow.pop %v1383
  %v1385 = vmul.f32 %v1239, 1.442695
  %v1386 = vpow.pop %v1385
  %v1387 = vmul.f32 %v1240, 1.442695
  %v1388 = vpow.pop %v1387
  %v1389 = vmul.f32 %v1241, 1.442695
  %v1390 = vpow.pop %v1389
  %v1391 = vmul.f32 %v1242, 1.442695
  %v1392 = vpow.pop %v1391
  %v1393 = vmul.f32 %v1243, 1.442695
  %v1394 = vpow.pop %v1393
  %v1395 = vmul.f32 %v1244, 1.442695
  %v1396 = vpow.pop %v1395
  %v1397 = vmul.f32 %v1245, 1.442695
  %v1398 = vpow.pop %v1397
  %v1399 = vmul.f32 %v1246, 1.442695
  %v1400 = vpow.pop %v1399
  %v1401 = vmul.f32 %v1247, 1.442695
  %v1402 = vpow.pop %v1401
  %v1403 = vmul.f32 %v1248, 1.442695
  %v1404 = vpow.pop %v1403
  %v1405 = vmul.f32 %v1249, 1.442695
  %v1406 = vpow.pop %v1405
  %v1407 = vmul.f32 %v1250, 1.442695
  %v1408 = vpow.pop %v1407
  %v1409 = vmul.f32 %v1251, 1.442695
  %v1410 = vpow.pop %v1409
  %v1411 = vmul.f32 %v1252, 1.442695
  %v1412 = vpow.pop %v1411
  %v1413 = vmul.f32 %v1253, 1.442695
  %v1414 = vpow.pop %v1413
  %v1415 = vmul.f32 %v1254, 1.442695
  %v1416 = vpow.pop %v1415
  %v1417 = vmul.f32 %v1255, 1.442695
  %v1418 = vpow.pop %v1417
  %v1419 = vmul.f32 %v1256, 1.442695
  %v1420 = vpow.pop %v1419
  %v1421 = vmul.f32 %v1257, 1.442695
  %v1422 = vpow.pop %v1421
  %v1423 = vmul.f32 %v1258, 1.442695
  %v1424 = vpow.pop %v1423
  %v1425 = vmul.f32 %v1259, 1.442695
  %v1426 = vpow.pop %v1425
  %v1427 = vmul.f32 %v1260, 1.442695
  %v1428 = vpow.pop %v1427
  %v1429 = vmul.f32 %v1261, 1.442695
  %v1430 = vpow.pop %v1429
  %v1431 = vmul.f32 %v1262, 1.442695
  %v1432 = vpow.pop %v1431
  %v1433 = vmul.f32 %v1263, 1.442695
  %v1434 = vpow.pop %v1433
  %v1435 = vmul.f32 %v1264, 1.442695
  %v1436 = vpow.pop %v1435
  %v1437 = vmul.f32 %v1265, 1.442695
  %v1438 = vpow.pop %v1437
  %v1439 = vmul.f32 %v1266, 1.442695
  %v1440 = vpow.pop %v1439
  %v1441 = vmul.f32 %v1267, 1.442695
  %v1442 = vpow.pop %v1441
  %v1443 = vmul.f32 %v1268, 1.442695
  %v1444 = vpow.pop %v1443
  %v1445 = vmul.f32 %v1269, 1.442695
  %v1446 = vpow.pop %v1445
  %v1447 = vmul.f32 %v1270, 1.442695
  %v1448 = vpow.pop %v1447
  %v1449 = vmul.f32 %v1271, 1.442695
  %v1450 = vpow.pop %v1449
  %v1451 = vmul.f32 %v1272, 1.442695
  %v1452 = vpow.pop %v1451
  %v1453 = vmul.f32 %v1273, 1.442695
  %v1454 = vpow.pop %v1453
  %v1455 = vmul.f32 %v1274, 1.442695
  %v1456 = vpow.pop %v1455
  %v1457 = vmul.f32 %v1275, 1.442695
  %v1458 = vpow.pop %v1457
  %v1459 = vmul.f32 %v1276, 1.442695
  %v1460 = vpow.pop %v1459
  %v1461 = vmul.f32 %v1277, 1.442695
  %v1462 = vpow.pop %v1461
  %v1463 = vmul.f32 %v1278, 1.442695
  %v1464 = vpow.pop %v1463
  %v1465 = vmul.f32 %v1279, 1.442695
  %v1466 = vpow.pop %v1465
  %v1467 = vmul.f32 %v1280, 1.442695
  %v1468 = vpow.pop %v1467
  %v1469 = vmul.f32 %v1281, 1.442695
  %v1470 = vpow.pop %v1469
  %v1471 = vmul.f32 %v1282, 1.442695
  %v1472 = vpow.pop %v1471
  %v1473 = vmul.f32 %v1283, 1.442695
  %v1474 = vpow.pop %v1473
  %v1475 = vmul.f32 %v1284, 1.442695
  %v1476 = vpow.pop %v1475
  %v1477 = vmul.f32 %v1285, 1.442695
  %v1478 = vpow.pop %v1477
  %v1479 = vmul.f32 %v1286, 1.442695
  %v1480 = vpow.pop %v1479
  %v1481 = vmul.f32 %v1287, 1.442695
  %v1482 = vpow.pop %v1481
  %v1483 = vmul.f32 %v1288, 1.442695
  %v1484 = vpow.pop %v1483
  %v1485 = vmul.f32 %v1289, 1.442695
  %v1486 = vpow.pop %v1485
  %v1487 = vmul.f32 %v1290, 1.442695
  %v1488 = vpow.pop %v1487
  %v1489 = vmul.f32 %v1291, 1.442695
  %v1490 = vpow.pop %v1489
  %v1491 = vmul.f32 %v1292, 1.442695
  %v1492 = vpow.pop %v1491
  %v1493 = vmul.f32 %v1293, 1.442695
  %v1494 = vpow.pop %v1493
  %v1495 = vmul.f32 %v1294, 1.442695
  %v1496 = vpow.pop %v1495
  %v1497 = vmul.f32 %v1295, 1.442695
  %v1498 = vpow.pop %v1497
  %v1499 = vmul.f32 %v1296, 1.442695
  %v1500 = vpow.pop %v1499
  %v1501 = vmul.f32 %v1297, 1.442695
  %v1502 = vpow.pop %v1501
  %v1503 = vmul.f32 %v1298, 1.442695
  %v1504 = vpow.pop %v1503
  %v1505 = vmul.f32 %v1299, 1.442695
  %v1506 = vpow.pop %v1505
  %v1507 = vmul.f32 %v1300, 1.442695
  %v1508 = vpow.pop %v1507
  %v1509 = vmul.f32 %v1301, 1.442695
  %v1510 = vpow.pop %v1509
  %v1511 = vmul.f32 %v1302, 1.442695
  %v1512 = vpow.pop %v1511
  %v1513 = vmul.f32 %v1303, 1.442695
  %v1514 = vpow.pop %v1513
  %v1515 = vmul.f32 %v1304, 1.442695
  %v1516 = vpow.pop %v1515
  %v1517 = vmul.f32 %v1305, 1.442695
  %v1518 = vpow.pop %v1517
  %v1519 = vmul.f32 %v1306, 1.442695
  %v1520 = vpow.pop %v1519
  %v1521 = vmul.f32 %v1307, 1.442695
  %v1522 = vpow.pop %v1521
  %v1523 = vmul.f32 %v1308, 1.442695
  %v1524 = vpow.pop %v1523
  %v1525 = vmul.f32 %v1309, 1.442695
  %v1526 = vpow.pop %v1525
  %v1527 = vmul.f32 %v1310, 1.442695
  %v1528 = vpow.pop %v1527
  %v1529 = vmul.f32 %v1311, 1.442695
  %v1530 = vpow.pop %v1529
  %v1531 = vmul.f32 %v1312, 1.442695
  %v1532 = vpow.pop %v1531
  %v1533 = vmul.f32 %v1313, 1.442695
  %v1534 = vpow.pop %v1533
  %v1535 = vmul.f32 %v1314, 1.442695
  %v1536 = vpow.pop %v1535
  %v1537 = vmul.f32 %v1315, 1.442695
  %v1538 = vpow.pop %v1537
  %v1539 = vmul.f32 %v1316, 1.442695
  %v1540 = vpow.pop %v1539
  %v1541 = vmul.f32 %v1317, 1.442695
  %v1542 = vpow.pop %v1541
  %v1543 = vmul.f32 %v1318, 1.442695
  %v1544 = vpow.pop %v1543
  %v1545 = vmul.f32 %v1319, 1.442695
  %v1546 = vpow.pop %v1545
  %v1547 = vmul.f32 %v1320, 1.442695
  %v1548 = vpow.pop %v1547
  %v1549 = vmul.f32 %v1321, 1.442695
  %v1550 = vpow.pop %v1549
  %v1551 = vmul.f32 %v1322, 1.442695
  %v1552 = vpow.pop %v1551
  %v1553 = vmul.f32 %v1323, 1.442695
  %v1554 = vpow.pop %v1553
  %v1555 = vmul.f32 %v1324, 1.442695
  %v1556 = vpow.pop %v1555
  %v1557 = vmul.f32 %v1325, 1.442695
  %v1558 = vpow.pop %v1557
  %v1559 = vmul.f32 %v1326, 1.442695
  %v1560 = vpow.pop %v1559
  %v1561 = vmul.f32 %v1327, 1.442695
  %v1562 = vpow.pop %v1561
  %v1563 = vmul.f32 %v1328, 1.442695
  %v1564 = vpow.pop %v1563
  %v1565 = vmul.f32 %v1329, 1.442695
  %v1566 = vpow.pop %v1565
  %v1567 = vmul.f32 %v1330, 1.442695
  %v1568 = vpow.pop %v1567
  %v1569 = vmul.f32 %v1331, 1.442695
  %v1570 = vpow.pop %v1569
  %v1571 = vmul.f32 %v1332, 1.442695
  %v1572 = vpow.pop %v1571
  %v1573 = vmul.f32 %v1333, 1.442695
  %v1574 = vpow.pop %v1573
  %v1575 = vmul.f32 %v1334, 1.442695
  %v1576 = vpow.pop %v1575
  %v1577 = vmul.f32 %v1335, 1.442695
  %v1578 = vpow.pop %v1577
  %v1579 = vmul.f32 %v1336, 1.442695
  %v1580 = vpow.pop %v1579
  %v1581 = vmul.f32 %v1337, 1.442695
  %v1582 = vpow.pop %v1581
  %v1583 = vmul.f32 %v1338, 1.442695
  %v1584 = vpow.pop %v1583
  %v1585 = vmul.f32 %v1339, 1.442695
  %v1586 = vpow.pop %v1585
  %v1587 = vmul.f32 %v1340, 1.442695
  %v1588 = vpow.pop %v1587
  %v1589 = vmul.f32 %v1341, 1.442695
  %v1590 = vpow.pop %v1589
  %v1591 = vmul.f32 %v1342, 1.442695
  %v1592 = vpow.pop %v1591
  %v1593 = vadd.f32 %v1344, 1.0
  %v1594 = vadd.f32 %v1346, 1.0
  %v1595 = vadd.f32 %v1348, 1.0
  %v1596 = vadd.f32 %v1350, 1.0
  %v1597 = vadd.f32 %v1352, 1.0
  %v1598 = vadd.f32 %v1354, 1.0
  %v1599 = vadd.f32 %v1356, 1.0
  %v1600 = vadd.f32 %v1358, 1.0
  %v1601 = vadd.f32 %v1360, 1.0
  %v1602 = vadd.f32 %v1362, 1.0
  %v1603 = vadd.f32 %v1364, 1.0
  %v1604 = vadd.f32 %v1366, 1.0
  %v1605 = vadd.f32 %v1368, 1.0
  %v1606 = vadd.f32 %v1370, 1.0
  %v1607 = vadd.f32 %v1372, 1.0
  %v1608 = vadd.f32 %v1374, 1.0
  %v1609 = vadd.f32 %v1376, 1.0
  %v1610 = vadd.f32 %v1378, 1.0
  %v1611 = vadd.f32 %v1380, 1.0
  %v1612 = vadd.f32 %v1382, 1.0
  %v1613 = vadd.f32 %v1384, 1.0
  %v1614 = vadd.f32 %v1386, 1.0
  %v1615 = vadd.f32 %v1388, 1.0
  %v1616 = vadd.f32 %v1390, 1.0
  %v1617 = vadd.f32 %v1392, 1.0
  %v1618 = vadd.f32 %v1394, 1.0
  %v1619 = vadd.f32 %v1396, 1.0
  %v1620 = vadd.f32 %v1398, 1.0
  %v1621 = vadd.f32 %v1400, 1.0
  %v1622 = vadd.f32 %v1402, 1.0
  %v1623 = vadd.f32 %v1404, 1.0
  %v1624 = vadd.f32 %v1406, 1.0
  %v1625 = vadd.f32 %v1408, 1.0
  %v1626 = vadd.f32 %v1410, 1.0
  %v1627 = vadd.f32 %v1412, 1.0
  %v1628 = vadd.f32 %v1414, 1.0
  %v1629 = vadd.f32 %v1416, 1.0
  %v1630 = vadd.f32 %v1418, 1.0
  %v1631 = vadd.f32 %v1420, 1.0
  %v1632 = vadd.f32 %v1422, 1.0
  %v1633 = vadd.f32 %v1424, 1.0
  %v1634 = vadd.f32 %v1426, 1.0
  %v1635 = vadd.f32 %v1428, 1.0
  %v1636 = vadd.f32 %v1430, 1.0
  %v1637 = vadd.f32 %v1432, 1.0
  %v1638 = vadd.f32 %v1434, 1.0
  %v1639 = vadd.f32 %v1436, 1.0
  %v1640 = vadd.f32 %v1438, 1.0
  %v1641 = vadd.f32 %v1440, 1.0
  %v1642 = vadd.f32 %v1442, 1.0
  %v1643 = vadd.f32 %v1444, 1.0
  %v1644 = vadd.f32 %v1446, 1.0
  %v1645 = vadd.f32 %v1448, 1.0
  %v1646 = vadd.f32 %v1450, 1.0
  %v1647 = vadd.f32 %v1452, 1.0
  %v1648 = vadd.f32 %v1454, 1.0
  %v1649 = vadd.f32 %v1456, 1.0
  %v1650 = vadd.f32 %v1458, 1.0
  %v1651 = vadd.f32 %v1460, 1.0
  %v1652 = vadd.f32 %v1462, 1.0
  %v1653 = vadd.f32 %v1464, 1.0
  %v1654 = vadd.f32 %v1466, 1.0
  %v1655 = vadd.f32 %v1468, 1.0
  %v1656 = vadd.f32 %v1470, 1.0
  %v1657 = vadd.f32 %v1472, 1.0
  %v1658 = vadd.f32 %v1474, 1.0
  %v1659 = vadd.f32 %v1476, 1.0
  %v1660 = vadd.f32 %v1478, 1.0
  %v1661 = vadd.f32 %v1480, 1.0
  %v1662 = vadd.f32 %v1482, 1.0
  %v1663 = vadd.f32 %v1484, 1.0
  %v1664 = vadd.f32 %v1486, 1.0
  %v1665 = vadd.f32 %v1488, 1.0
  %v1666 = vadd.f32 %v1490, 1.0
  %v1667 = vadd.f32 %v1492, 1.0
  %v1668 = vadd.f32 %v1494, 1.0
  %v1669 = vadd.f32 %v1496, 1.0
  %v1670 = vadd.f32 %v1498, 1.0
  %v1671 = vadd.f32 %v1500, 1.0
  %v1672 = vadd.f32 %v1502, 1.0
  %v1673 = vadd.f32 %v1504, 1.0
  %v1674 = vadd.f32 %v1506, 1.0
  %v1675 = vadd.f32 %v1508, 1.0
  %v1676 = vadd.f32 %v1510, 1.0
  %v1677 = vadd.f32 %v1512, 1.0
  %v1678 = vadd.f32 %v1514, 1.0
  %v1679 = vadd.f32 %v1516, 1.0
  %v1680 = vadd.f32 %v1518, 1.0
  %v1681 = vadd.f32 %v1520, 1.0
  %v1682 = vadd.f32 %v1522, 1.0
  %v1683 = vadd.f32 %v1524, 1.0
  %v1684 = vadd.f32 %v1526, 1.0
  %v1685 = vadd.f32 %v1528, 1.0
  %v1686 = vadd.f32 %v1530, 1.0
  %v1687 = vadd.f32 %v1532, 1.0
  %v1688 = vadd.f32 %v1534, 1.0
  %v1689 = vadd.f32 %v1536, 1.0
  %v1690 = vadd.f32 %v1538, 1.0
  %v1691 = vadd.f32 %v1540, 1.0
  %v1692 = vadd.f32 %v1542, 1.0
  %v1693 = vadd.f32 %v1544, 1.0
  %v1694 = vadd.f32 %v1546, 1.0
  %v1695 = vadd.f32 %v1548, 1.0
  %v1696 = vadd.f32 %v1550, 1.0
  %v1697 = vadd.f32 %v1552, 1.0
  %v1698 = vadd.f32 %v1554, 1.0
  %v1699 = vadd.f32 %v1556, 1.0
  %v1700 = vadd.f32 %v1558, 1.0
  %v1701 = vadd.f32 %v1560, 1.0
  %v1702 = vadd.f32 %v1562, 1.0
  %v1703 = vadd.f32 %v1564, 1.0
  %v1704 = vadd.f32 %v1566, 1.0
  %v1705 = vadd.f32 %v1568, 1.0
  %v1706 = vadd.f32 %v1570, 1.0
  %v1707 = vadd.f32 %v1572, 1.0
  %v1708 = vadd.f32 %v1574, 1.0
  %v1709 = vadd.f32 %v1576, 1.0
  %v1710 = vadd.f32 %v1578, 1.0
  %v1711 = vadd.f32 %v1580, 1.0
  %v1712 = vadd.f32 %v1582, 1.0
  %v1713 = vadd.f32 %v1584, 1.0
  %v1714 = vadd.f32 %v1586, 1.0
  %v1715 = vadd.f32 %v1588, 1.0
  %v1716 = vadd.f32 %v1590, 1.0
  %v1717 = vadd.f32 %v1592, 1.0
  %v1718 = vrcp.pop %v1593
  %v1719 = vrcp.pop %v1594
  %v1720 = vrcp.pop %v1595
  %v1721 = vrcp.pop %v1596
  %v1722 = vrcp.pop %v1597
  %v1723 = vrcp.pop %v1598
  %v1724 = vrcp.pop %v1599
  %v1725 = vrcp.pop %v1600
  %v1726 = vrcp.pop %v1601
  %v1727 = vrcp.pop %v1602
  %v1728 = vrcp.pop %v1603
  %v1729 = vrcp.pop %v1604
  %v1730 = vrcp.pop %v1605
  %v1731 = vrcp.pop %v1606
  %v1732 = vrcp.pop %v1607
  %v1733 = vrcp.pop %v1608
  %v1734 = vrcp.pop %v1609
  %v1735 = vrcp.pop %v1610
  %v1736 = vrcp.pop %v1611
  %v1737 = vrcp.pop %v1612
  %v1738 = vrcp.pop %v1613
  %v1739 = vrcp.pop %v1614
  %v1740 = vrcp.pop %v1615
  %v1741 = vrcp.pop %v1616
  %v1742 = vrcp.pop %v1617
  %v1743 = vrcp.pop %v1618
  %v1744 = vrcp.pop %v1619
  %v1745 = vrcp.pop %v1620
  %v1746 = vrcp.pop %v1621
  %v1747 = vrcp.pop %v1622
  %v1748 = vrcp.pop %v1623
  %v1749 = vrcp.pop %v1624
  %v1750 = vrcp.pop %v1625
  %v1751 = vrcp.pop %v1626
  %v1752 = vrcp.pop %v1627
  %v1753 = vrcp.pop %v1628
  %v1754 = vrcp.pop %v1629
  %v1755 = vrcp.pop %v1630
  %v1756 = vrcp.pop %v1631
  %v1757 = vrcp.pop %v1632
  %v1758 = vrcp.pop %v1633
  %v1759 = vrcp.pop %v1634
  %v1760 = vrcp.pop %v1635
  %v1761 = vrcp.pop %v1636
  %v1762 = vrcp.pop %v1637
  %v1763 = vrcp.pop %v1638
  %v1764 = vrcp.pop %v1639
  %v1765 = vrcp.pop %v1640
  %v1766 = vrcp.pop %v1641
  %v1767 = vrcp.pop %v1642
  %v1768 = vrcp.pop %v1643
  %v1769 = vrcp.pop %v1644
  %v1770 = vrcp.pop %v1645
  %v1771 = vrcp.pop %v1646
  %v1772 = vrcp.pop %v1647
  %v1773 = vrcp.pop %v1648
  %v1774 = vrcp.pop %v1649
  %v1775 = vrcp.pop %v1650
  %v1776 = vrcp.pop %v1651
  %v1777 = vrcp.pop %v1652
  %v1778 = vrcp.pop %v1653
  %v1779 = vrcp.pop %v1654
  %v1780 = vrcp.pop %v1655
  %v1781 = vrcp.pop %v1656
  %v1782 = vrcp.pop %v1657
  %v1783 = vrcp.pop %v1658
  %v1784 = vrcp.pop %v1659
  %v1785 = vrcp.pop %v1660
  %v1786 = vrcp.pop %v1661
  %v1787 = vrcp.pop %v1662
  %v1788 = vrcp.pop %v1663
  %v1789 = vrcp.pop %v1664
  %v1790 = vrcp.pop %v1665
  %v1791 = vrcp.pop %v1666
  %v1792 = vrcp.pop %v1667
  %v1793 = vrcp.pop %v1668
  %v1794 = vrcp.pop %v1669
  %v1795 = vrcp.pop %v1670
  %v1796 = vrcp.pop %v1671
  %v1797 = vrcp.pop %v1672
  %v1798 = vrcp.pop %v1673
  %v1799 = vrcp.pop %v1674
  %v1800 = vrcp.pop %v1675
  %v1801 = vrcp.pop %v1676
  %v1802 = vrcp.pop %v1677
  %v1803 = vrcp.pop %v1678
  %v1804 = vrcp.pop %v1679
  %v1805 = vrcp.pop %v1680
  %v1806 = vrcp.pop %v1681
  %v1807 = vrcp.pop %v1682
  %v1808 = vrcp.pop %v1683
  %v1809 = vrcp.pop %v1684
  %v1810 = vrcp.pop %v1685
  %v1811 = vrcp.pop %v1686
  %v1812 = vrcp.pop %v1687
  %v1813 = vrcp.pop %v1688
  %v1814 = vrcp.pop %v1689
  %v1815 = vrcp.pop %v1690
  %v1816 = vrcp.pop %v1691
  %v1817 = vrcp.pop %v1692
  %v1818 = vrcp.pop %v1693
  %v1819 = vrcp.pop %v1694
  %v1820 = vrcp.pop %v1695
  %v1821 = vrcp.pop %v1696
  %v1822 = vrcp.pop %v1697
  %v1823 = vrcp.pop %v1698
  %v1824 = vrcp.pop %v1699
  %v1825 = vrcp.pop %v1700
  %v1826 = vrcp.pop %v1701
  %v1827 = vrcp.pop %v1702
  %v1828 = vrcp.pop %v1703
  %v1829 = vrcp.pop %v1704
  %v1830 = vrcp.pop %v1705
  %v1831 = vrcp.pop %v1706
  %v1832 = vrcp.pop %v1707
  %v1833 = vrcp.pop %v1708
  %v1834 = vrcp.pop %v1709
  %v1835 = vrcp.pop %v1710
  %v1836 = vrcp.pop %v1711
  %v1837 = vrcp.pop %v1712
  %v1838 = vrcp.pop %v1713
  %v1839 = vrcp.pop %v1714
  %v1840 = vrcp.pop %v1715
  %v1841 = vrcp.pop %v1716
  %v1842 = vrcp.pop %v1717
  %vm1843 = vcmask 15360
  %1844 = vst.msk [vmem:[%s3] sm:$0xff] %vm1843, %v1718
  %1845 = vst.msk [vmem:[%s3 + $0x8] sm:$0xff] %vm1843, %v1719
  %1846 = vst.msk [vmem:[%s3 + $0x10] sm:$0xff] %vm1843, %v1720
  %1847 = vst.msk [vmem:[%s3 + $0x18] sm:$0xff] %vm1843, %v1721
  %1848 = vst.msk [vmem:[%s3 + $0x20] sm:$0xff] %vm1843, %v1722
  %1849 = vst.msk [vmem:[%s3 + $0x28] sm:$0xff] %vm1843, %v1723
  %1850 = vst.msk [vmem:[%s3 + $0x30] sm:$0xff] %vm1843, %v1724
  %1851 = vst.msk [vmem:[%s3 + $0x38] sm:$0xff] %vm1843, %v1725
  %1852 = vst.msk [vmem:[%s3 + $0x40] sm:$0xff] %vm1843, %v1726
  %1853 = vst.msk [vmem:[%s3 + $0x48] sm:$0xff] %vm1843, %v1727
  %1854 = vst.msk [vmem:[%s3 + $0x50] sm:$0xff] %vm1843, %v1728
  %1855 = vst.msk [vmem:[%s3 + $0x58] sm:$0xff] %vm1843, %v1729
  %1856 = vst.msk [vmem:[%s3 + $0x60] sm:$0xff] %vm1843, %v1730
  %1857 = vst.msk [vmem:[%s3 + $0x68] sm:$0xff] %vm1843, %v1731
  %1858 = vst.msk [vmem:[%s3 + $0x70] sm:$0xff] %vm1843, %v1732
  %1859 = vst.msk [vmem:[%s3 + $0x78] sm:$0xff] %vm1843, %v1733
  %1860 = vst.msk [vmem:[%s3 + $0x80] sm:$0xff] %vm1843, %v1734
  %1861 = vst.msk [vmem:[%s3 + $0x88] sm:$0xff] %vm1843, %v1735
  %1862 = vst.msk [vmem:[%s3 + $0x90] sm:$0xff] %vm1843, %v1736
  %1863 = vst.msk [vmem:[%s3 + $0x98] sm:$0xff] %vm1843, %v1737
  %1864 = vst.msk [vmem:[%s3 + $0xa0] sm:$0xff] %vm1843, %v1738
  %1865 = vst.msk [vmem:[%s3 + $0xa8] sm:$0xff] %vm1843, %v1739
  %1866 = vst.msk [vmem:[%s3 + $0xb0] sm:$0xff] %vm1843, %v1740
  %1867 = vst.msk [vmem:[%s3 + $0xb8] sm:$0xff] %vm1843, %v1741
  %1868 = vst.msk [vmem:[%s3 + $0xc0] sm:$0xff] %vm1843, %v1742
  %1869 = vst.msk [vmem:[%s3 + $0xc8] sm:$0xff] %vm1843, %v1743
  %1870 = vst.msk [vmem:[%s3 + $0xd0] sm:$0xff] %vm1843, %v1744
  %1871 = vst.msk [vmem:[%s3 + $0xd8] sm:$0xff] %vm1843, %v1745
  %1872 = vst.msk [vmem:[%s3 + $0xe0] sm:$0xff] %vm1843, %v1746
  %1873 = vst.msk [vmem:[%s3 + $0xe8] sm:$0xff] %vm1843, %v1747
  %1874 = vst.msk [vmem:[%s3 + $0xf0] sm:$0xff] %vm1843, %v1748
  %1875 = vst.msk [vmem:[%s3 + $0xf8] sm:$0xff] %vm1843, %v1749
  %1876 = vst.msk [vmem:[%s3 + $0x100] sm:$0xff] %vm1843, %v1750
  %1877 = vst.msk [vmem:[%s3 + $0x108] sm:$0xff] %vm1843, %v1751
  %1878 = vst.msk [vmem:[%s3 + $0x110] sm:$0xff] %vm1843, %v1752
  %1879 = vst.msk [vmem:[%s3 + $0x118] sm:$0xff] %vm1843, %v1753
  %1880 = vst.msk [vmem:[%s3 + $0x120] sm:$0xff] %vm1843, %v1754
  %1881 = vst.msk [vmem:[%s3 + $0x128] sm:$0xff] %vm1843, %v1755
  %1882 = vst.msk [vmem:[%s3 + $0x130] sm:$0xff] %vm1843, %v1756
  %1883 = vst.msk [vmem:[%s3 + $0x138] sm:$0xff] %vm1843, %v1757
  %1884 = vst.msk [vmem:[%s3 + $0x140] sm:$0xff] %vm1843, %v1758
  %1885 = vst.msk [vmem:[%s3 + $0x148] sm:$0xff] %vm1843, %v1759
  %1886 = vst.msk [vmem:[%s3 + $0x150] sm:$0xff] %vm1843, %v1760
  %1887 = vst.msk [vmem:[%s3 + $0x158] sm:$0xff] %vm1843, %v1761
  %1888 = vst.msk [vmem:[%s3 + $0x160] sm:$0xff] %vm1843, %v1762
  %1889 = vst.msk [vmem:[%s3 + $0x168] sm:$0xff] %vm1843, %v1763
  %1890 = vst.msk [vmem:[%s3 + $0x170] sm:$0xff] %vm1843, %v1764
  %1891 = vst.msk [vmem:[%s3 + $0x178] sm:$0xff] %vm1843, %v1765
  %1892 = vst.msk [vmem:[%s3 + $0x180] sm:$0xff] %vm1843, %v1766
  %1893 = vst.msk [vmem:[%s3 + $0x188] sm:$0xff] %vm1843, %v1767
  %1894 = vst.msk [vmem:[%s3 + $0x190] sm:$0xff] %vm1843, %v1768
  %1895 = vst.msk [vmem:[%s3 + $0x198] sm:$0xff] %vm1843, %v1769
  %1896 = vst.msk [vmem:[%s3 + $0x1a0] sm:$0xff] %vm1843, %v1770
  %1897 = vst.msk [vmem:[%s3 + $0x1a8] sm:$0xff] %vm1843, %v1771
  %1898 = vst.msk [vmem:[%s3 + $0x1b0] sm:$0xff] %vm1843, %v1772
  %1899 = vst.msk [vmem:[%s3 + $0x1b8] sm:$0xff] %vm1843, %v1773
  %1900 = vst.msk [vmem:[%s3 + $0x1c0] sm:$0xff] %vm1843, %v1774
  %1901 = vst.msk [vmem:[%s3 + $0x1c8] sm:$0xff] %vm1843, %v1775
  %1902 = vst.msk [vmem:[%s3 + $0x1d0] sm:$0xff] %vm1843, %v1776
  %1903 = vst.msk [vmem:[%s3 + $0x1d8] sm:$0xff] %vm1843, %v1777
  %1904 = vst.msk [vmem:[%s3 + $0x1e0] sm:$0xff] %vm1843, %v1778
  %1905 = vst.msk [vmem:[%s3 + $0x1e8] sm:$0xff] %vm1843, %v1779
  %1906 = vst.msk [vmem:[%s3 + $0x1f0] sm:$0xff] %vm1843, %v1780
  %1907 = vst.msk [vmem:[%s3 + $0x1f8] sm:$0xff] %vm1843, %v1781
  %1908 = vst.msk [vmem:[%s3 + $0x200] sm:$0xff] %vm1843, %v1782
  %1909 = vst.msk [vmem:[%s3 + $0x208] sm:$0xff] %vm1843, %v1783
  %1910 = vst.msk [vmem:[%s3 + $0x210] sm:$0xff] %vm1843, %v1784
  %1911 = vst.msk [vmem:[%s3 + $0x218] sm:$0xff] %vm1843, %v1785
  %1912 = vst.msk [vmem:[%s3 + $0x220] sm:$0xff] %vm1843, %v1786
  %1913 = vst.msk [vmem:[%s3 + $0x228] sm:$0xff] %vm1843, %v1787
  %1914 = vst.msk [vmem:[%s3 + $0x230] sm:$0xff] %vm1843, %v1788
  %1915 = vst.msk [vmem:[%s3 + $0x238] sm:$0xff] %vm1843, %v1789
  %1916 = vst.msk [vmem:[%s3 + $0x240] sm:$0xff] %vm1843, %v1790
  %1917 = vst.msk [vmem:[%s3 + $0x248] sm:$0xff] %vm1843, %v1791
  %1918 = vst.msk [vmem:[%s3 + $0x250] sm:$0xff] %vm1843, %v1792
  %1919 = vst.msk [vmem:[%s3 + $0x258] sm:$0xff] %vm1843, %v1793
  %1920 = vst.msk [vmem:[%s3 + $0x260] sm:$0xff] %vm1843, %v1794
  %1921 = vst.msk [vmem:[%s3 + $0x268] sm:$0xff] %vm1843, %v1795
  %1922 = vst.msk [vmem:[%s3 + $0x270] sm:$0xff] %vm1843, %v1796
  %1923 = vst.msk [vmem:[%s3 + $0x278] sm:$0xff] %vm1843, %v1797
  %1924 = vst.msk [vmem:[%s3 + $0x280] sm:$0xff] %vm1843, %v1798
  %1925 = vst.msk [vmem:[%s3 + $0x288] sm:$0xff] %vm1843, %v1799
  %1926 = vst.msk [vmem:[%s3 + $0x290] sm:$0xff] %vm1843, %v1800
  %1927 = vst.msk [vmem:[%s3 + $0x298] sm:$0xff] %vm1843, %v1801
  %1928 = vst.msk [vmem:[%s3 + $0x2a0] sm:$0xff] %vm1843, %v1802
  %1929 = vst.msk [vmem:[%s3 + $0x2a8] sm:$0xff] %vm1843, %v1803
  %1930 = vst.msk [vmem:[%s3 + $0x2b0] sm:$0xff] %vm1843, %v1804
  %1931 = vst.msk [vmem:[%s3 + $0x2b8] sm:$0xff] %vm1843, %v1805
  %1932 = vst.msk [vmem:[%s3 + $0x2c0] sm:$0xff] %vm1843, %v1806
  %1933 = vst.msk [vmem:[%s3 + $0x2c8] sm:$0xff] %vm1843, %v1807
  %1934 = vst.msk [vmem:[%s3 + $0x2d0] sm:$0xff] %vm1843, %v1808
  %1935 = vst.msk [vmem:[%s3 + $0x2d8] sm:$0xff] %vm1843, %v1809
  %1936 = vst.msk [vmem:[%s3 + $0x2e0] sm:$0xff] %vm1843, %v1810
  %1937 = vst.msk [vmem:[%s3 + $0x2e8] sm:$0xff] %vm1843, %v1811
  %1938 = vst.msk [vmem:[%s3 + $0x2f0] sm:$0xff] %vm1843, %v1812
  %1939 = vst.msk [vmem:[%s3 + $0x2f8] sm:$0xff] %vm1843, %v1813
  %1940 = vst.msk [vmem:[%s3 + $0x300] sm:$0xff] %vm1843, %v1814
  %1941 = vst.msk [vmem:[%s3 + $0x308] sm:$0xff] %vm1843, %v1815
  %1942 = vst.msk [vmem:[%s3 + $0x310] sm:$0xff] %vm1843, %v1816
  %1943 = vst.msk [vmem:[%s3 + $0x318] sm:$0xff] %vm1843, %v1817
  %1944 = vst.msk [vmem:[%s3 + $0x320] sm:$0xff] %vm1843, %v1818
  %1945 = vst.msk [vmem:[%s3 + $0x328] sm:$0xff] %vm1843, %v1819
  %1946 = vst.msk [vmem:[%s3 + $0x330] sm:$0xff] %vm1843, %v1820
  %1947 = vst.msk [vmem:[%s3 + $0x338] sm:$0xff] %vm1843, %v1821
  %1948 = vst.msk [vmem:[%s3 + $0x340] sm:$0xff] %vm1843, %v1822
  %1949 = vst.msk [vmem:[%s3 + $0x348] sm:$0xff] %vm1843, %v1823
  %1950 = vst.msk [vmem:[%s3 + $0x350] sm:$0xff] %vm1843, %v1824
  %1951 = vst.msk [vmem:[%s3 + $0x358] sm:$0xff] %vm1843, %v1825
  %1952 = vst.msk [vmem:[%s3 + $0x360] sm:$0xff] %vm1843, %v1826
  %1953 = vst.msk [vmem:[%s3 + $0x368] sm:$0xff] %vm1843, %v1827
  %1954 = vst.msk [vmem:[%s3 + $0x370] sm:$0xff] %vm1843, %v1828
  %1955 = vst.msk [vmem:[%s3 + $0x378] sm:$0xff] %vm1843, %v1829
  %1956 = vst.msk [vmem:[%s3 + $0x380] sm:$0xff] %vm1843, %v1830
  %1957 = vst.msk [vmem:[%s3 + $0x388] sm:$0xff] %vm1843, %v1831
  %1958 = vst.msk [vmem:[%s3 + $0x390] sm:$0xff] %vm1843, %v1832
  %1959 = vst.msk [vmem:[%s3 + $0x398] sm:$0xff] %vm1843, %v1833
  %1960 = vst.msk [vmem:[%s3 + $0x3a0] sm:$0xff] %vm1843, %v1834
  %1961 = vst.msk [vmem:[%s3 + $0x3a8] sm:$0xff] %vm1843, %v1835
  %1962 = vst.msk [vmem:[%s3 + $0x3b0] sm:$0xff] %vm1843, %v1836
  %1963 = vst.msk [vmem:[%s3 + $0x3b8] sm:$0xff] %vm1843, %v1837
  %1964 = vst.msk [vmem:[%s3 + $0x3c0] sm:$0xff] %vm1843, %v1838
  %1965 = vst.msk [vmem:[%s3 + $0x3c8] sm:$0xff] %vm1843, %v1839
  %1966 = vst.msk [vmem:[%s3 + $0x3d0] sm:$0xff] %vm1843, %v1840
  %1967 = vst.msk [vmem:[%s3 + $0x3d8] sm:$0xff] %vm1843, %v1841
  %1968 = vst.msk [vmem:[%s3 + $0x3e0] sm:$0xff] %vm1843, %v1842
  // Predicated region
  $region14: #{tpu_custom_call.1} parent=0 // pred_check
    _
  $region15: #{tpu_custom_call.1} parent=0 // pred_check_branch
    %1970 = sbr.rel (0) target = $region17
  $region16: #{tpu_custom_call.1} parent=0 // pred_region
    _
  $region17: #{tpu_custom_call.1} parent=0 // pred_fallthru
    _
  // Predicated region
  $region18: #{tpu_custom_call.1} parent=0 // pred_check
    _
  $region19: #{tpu_custom_call.1} parent=0 // pred_check_branch
    %1972 = sbr.rel (0) target = $region21
  $region20: #{tpu_custom_call.1} parent=0 // pred_region
    _
  $region21: #{tpu_custom_call.1} parent=0 // pred_fallthru
    _

</llo_original>
